<compile_context>
chip_gen: v7x
topology: tpu7x:2x2x1
jax: 0.10.0
libtpu: 0.0.40
codegen_flags: <defaults>
</compile_context>

<pallas_src>
import jax
import jax.numpy as jnp
from jax import lax
from jax.experimental import pallas as pl
from jax.experimental.pallas import tpu as pltpu

# ----------------------------- configuration --------------------------------
VOCAB = 50              # len(word2idx)
WORD_DIM = 32           # config.word_dim
EMBED_DIM = 32          # config.embed_size
HID = EMBED_DIM // 2    # GRU hidden per direction
D_H = WORD_DIM // 2     # attention hidden dim
NUM_EMBEDS = 1          # config.num_embeds (PCME default)
B = 16                  # batch
L = 8                   # max sequence length
LN_EPS = 1e-5           # torch.nn.LayerNorm default
OUT_W = 128             # lane-dense output width: [emb | logsig | no_attn | 0]


# --------------------------- reference GRU step ------------------------------
def _gru_step(h, x_t, wi, wh, bi, bh, hdim):
    """One PyTorch-convention GRU cell step (gate order r, z, n).  f32."""
    gi = jnp.dot(x_t, wi, preferred_element_type=jnp.float32) + bi
    gh = jnp.dot(h, wh, preferred_element_type=jnp.float32) + bh
    r = jax.nn.sigmoid(gi[:, :hdim] + gh[:, :hdim])
    z = jax.nn.sigmoid(gi[:, hdim:2 * hdim] + gh[:, hdim:2 * hdim])
    n = jnp.tanh(gi[:, 2 * hdim:] + r * gh[:, 2 * hdim:])
    return (1.0 - z) * n + z * h


# ------------------------------ Pallas kernel --------------------------------
def encoder_text_kernel(
    slab_ref,     # (L*BT, Dw)        bf16, time-major rows (t*BT + b)
    len_ref,      # (BT, 1)           int32 sequence lengths
    xlast_ref,    # (BT, Dw)          bf16, x at position lengths-1
    in_w_ref,     # (Dw, 3*H2+2*D_H)  bf16 [fused GRU wi | fused attn W1]
    wh_f_ref,     # (H2, 3*H2)        bf16 block-diag fused hidden weights
    wi_b_ref,     # (Dw, 3*H2)        bf16 fused backward-dir input weights
    att_w2_ref,   # (2*D_H, 2)        bf16 block-diag attention W2
    fc_w_ref,     # (2*Dw, 2*E)       bf16 block-diag PIE-fc | Uncertainty-fc
    bias_ref,     # (8, 128)          f32 packed constants (one per row)
    out_ref,      # (BT, OUT_W)       f32 [embedding | logsigma | no_attn | 0]
):
    LBT, Dw = slab_ref.shape
    BT = xlast_ref.shape[0]
    Lh = LBT // BT
    H2 = wh_f_ref.shape[0]            # fused hidden width = 2*HID (g1 | g2)
    G3 = 3 * H2
    H = H2 // 2
    E = fc_w_ref.shape[1] // 2
    W_IN = in_w_ref.shape[1]

    # --- unpack the lane-dense constant slab (one DMA for 7 tiny constants) --
    bias = bias_ref[...]
    in_bias = bias[0:1, :W_IN]         # fused bi (r/z hidden bias folded) | 0
    bi_b = bias[1:2, :G3]              # backward bi (r/z hidden bias folded)
    bh_f_n = bias[2:3, :H2]            # forward n-gate hidden bias
    bh_b_n = bias[3:4, :H2]            # backward n-gate hidden bias
    fc_b = bias[4:5, :2 * E]
    ln_g = bias[5:6, :E]
    ln_b = bias[6:7, :E]

    slab_bf = slab_ref[...]            # bf16 MXU operand
    lens = len_ref[...]                # (BT, 1) int32

    # --- single lane-dense input matmul: GRU gates (both GRUs) + attn hidden -
    big = jnp.dot(slab_bf, in_w_ref[...],
                  preferred_element_type=jnp.float32) + in_bias   # (LBT, 128)
    gi_all = big[:, :G3]                                          # (LBT, 96)
    h_att = jnp.tanh(big[:, G3:])                                 # (LBT, 32)
    logits = jnp.dot(h_att.astype(jnp.bfloat16), att_w2_ref[...],
                     preferred_element_type=jnp.float32)          # (LBT, 2)

    # per-timestep validity masks built in-kernel (no (L*BT,1) mask DMA)
    masks = [lens > t for t in range(Lh)]                         # (BT,1) bool

    wh_f = wh_f_ref[...]
    bh_f_n_bc = jnp.broadcast_to(bh_f_n, (BT, H2))   # hoisted out of the loop

    # --- fused forward recurrence (self.rnn fwd + uncertain_net.rnn fwd) -----
    # h stays f32; only the MXU operand is rounded to bf16 each step.
    h = jnp.zeros((BT, H2), jnp.float32)
    for t in range(Lh):
        lo = t * BT
        gi_t = gi_all[lo:lo + BT]
        gh = jnp.dot(h.astype(jnp.bfloat16), wh_f,
                     preferred_element_type=jnp.float32)          # (BT, 96)
        r = jax.nn.sigmoid(gi_t[:, :H2] + gh[:, :H2])
        z = jax.nn.sigmoid(gi_t[:, H2:2 * H2] + gh[:, H2:2 * H2])
        n = jnp.tanh(gi_t[:, 2 * H2:] + r * (gh[:, 2 * H2:] + bh_f_n_bc))
        h_new = (1.0 - z) * n + z * h
        h = jnp.where(masks[t], h_new, h)    # freeze on padding (packed seq)

    # --- fused backward direction: one reverse step from the zero state ------
    # (pack_padded semantics at lengths-1; h=0 so the hidden matmul vanishes.)
    gi_b = jnp.dot(xlast_ref[...], wi_b_ref[...],
                   preferred_element_type=jnp.float32) + bi_b     # (BT, 96)
    r_b = jax.nn.sigmoid(gi_b[:, :H2])
    z_b = jax.nn.sigmoid(gi_b[:, H2:2 * H2])
    n_b = jnp.tanh(gi_b[:, 2 * H2:] + r_b * bh_b_n)
    h_b = (1.0 - z_b) * n_b

    no_attn = jnp.concatenate([h[:, :H], h_b[:, :H]], axis=1)     # main BiGRU
    rnn2 = jnp.concatenate([h[:, H:], h_b[:, H:]], axis=1)        # uncert BiGRU

    # --- fused masked softmax (both attentions), two-pass, normalize once ----
    NEG = jnp.float32(-1e30)   # finite: avoids NaN on a fully-padded row
    lts = []
    m = None
    for t in range(Lh):
        lo = t * BT
        lt = jnp.where(masks[t], logits[lo:lo + BT], NEG)         # (BT, 2)
        lts.append(lt)
        m = lt if m is None else jnp.maximum(m, lt)

    slab_f32 = slab_bf.astype(jnp.float32)
    s = jnp.zeros((BT, 2), jnp.float32)
    resid_p = jnp.zeros((BT, Dw), jnp.float32)
    resid_u = jnp.zeros((BT, Dw), jnp.float32)
    for t in range(Lh):
        lo = t * BT
        e_t = jnp.exp(lts[t] - m)                                 # (BT, 2)
        s = s + e_t
        x_t = slab_f32[lo:lo + BT]
        resid_p = resid_p + e_t[:, 0:1] * x_t    # unnormalized PIE attention
        resid_u = resid_u + e_t[:, 1:2] * x_t    # unnormalized Unc attention
    inv = pl.reciprocal(s, approx=True)          # EUP; ~2^-12 rel err, OK here
    resid_p = resid_p * inv[:, 0:1]
    resid_u = resid_u * inv[:, 1:2]

    # --- fused PIE fc + Uncertainty fc (block-diagonal weights) --------------
    resid_cat = jnp.concatenate([resid_p, resid_u], axis=1)       # (BT, 2*Dw)
    fc_out = jnp.dot(resid_cat.astype(jnp.bfloat16), fc_w_ref[...],
                     preferred_element_type=jnp.float32) + fc_b   # (BT, 2*E)
    pie_res = jax.nn.sigmoid(fc_out[:, :E])
    unc_fc = fc_out[:, E:]

    # --- PIENet LayerNorm (f32) ----------------------------------------------
    y = no_attn + pie_res
    mu = jnp.mean(y, axis=-1, keepdims=True)
    var = jnp.mean((y - mu) ** 2, axis=-1, keepdims=True)
    emb = (y - mu) * lax.rsqrt(var + LN_EPS) * ln_g + ln_b

    # --- UncertaintyModuleText logsigma ---------------------------------------
    logsig = unc_fc + rnn2

    # single lane-dense 128-wide store: [embedding | logsigma | no_attn | pad]
    pad_w = out_ref.shape[1] - 3 * E
    out_ref[...] = jnp.concatenate(
        [emb, logsig, no_attn, jnp.zeros((BT, pad_w), jnp.float32)], axis=1)


# --------------------- wrapper-side weight fusion (glue) ----------------------
def _interleave_gates(wa, wb, h=HID):
    """Gate-interleaved concat of two GRUs: [r_a|r_b|z_a|z_b|n_a|n_b]."""
    return jnp.concatenate([wa[:, 0:h], wb[:, 0:h],
                            wa[:, h:2 * h], wb[:, h:2 * h],
                            wa[:, 2 * h:3 * h], wb[:, 2 * h:3 * h]], axis=1)


def _blockdiag_gates(wa, wb, h=HID):
    """Block-diagonal fused hidden->gate weights for two stacked GRUs."""
    z = jnp.zeros((h, h), jnp.float32)
    cols = []
    for g in range(3):
        top = jnp.concatenate([wa[:, g * h:(g + 1) * h], z], axis=1)
        bot = jnp.concatenate([z, wb[:, g * h:(g + 1) * h]], axis=1)
        cols.append(jnp.concatenate([top, bot], axis=0))
    return jnp.concatenate(cols, axis=1)


# ------------------------------ wrapper (glue) --------------------------------
def encoder_text_forward(tokens, lengths, p, *, batch_tile=None):
    Bsz, Lseq = tokens.shape
    # Single grid step by default: this kernel is launch/overhead-bound, so on
    # single-TC chips (v5e/v6e) -- and at this batch size even on v7x -- one
    # grid step beats sharding (each step costs ~0.35us + a fresh DMA set).
    if batch_tile is None:
        batch_tile = Bsz
    assert Bsz % batch_tile == 0
    nt = Bsz // batch_tile
    BT = batch_tile
    LBT = Lseq * BT
    H2 = 2 * HID

    # ---- glue: embedding lookup, gather at lengths-1, layout, bf16 cast -----
    wemb = p['embed'][tokens].astype(jnp.float32)                 # (B, L, Dw)
    x_last = wemb[jnp.arange(Bsz), lengths - 1].astype(jnp.bfloat16)

    # time-major within each batch tile: row = tile*L*BT + t*BT + b
    slab = wemb.reshape(nt, BT, Lseq, WORD_DIM)
    slab = jnp.transpose(slab, (0, 2, 1, 3)).reshape(nt * LBT, WORD_DIM)
    slab = slab.astype(jnp.bfloat16)            # halves the largest DMA

    len_col = lengths.astype(jnp.int32).reshape(Bsz, 1)

    # ---- glue: fuse the two BiGRUs / two attentions / two fc layers ---------
    wi_f = _interleave_gates(p['g1_wi'][0], p['g2_wi'][0])         # (Dw, 96)
    wh_f = _blockdiag_gates(p['g1_wh'][0], p['g2_wh'][0]).astype(jnp.bfloat16)
    bi_f = _interleave_gates(p['g1_bi'][0], p['g2_bi'][0])
    bh_f = _interleave_gates(p['g1_bh'][0], p['g2_bh'][0])
    wi_b = _interleave_gates(p['g1_wi'][1], p['g2_wi'][1]).astype(jnp.bfloat16)
    bi_b = _interleave_gates(p['g1_bi'][1], p['g2_bi'][1])
    bh_b = _interleave_gates(p['g1_bh'][1], p['g2_bh'][1])

    # fold the r/z hidden biases into the input-side biases; the n-gate hidden
    # bias stays separate because it is multiplied by r inside the cell.
    bi_f_fold = jnp.concatenate(
        [bi_f[:, :2 * H2] + bh_f[:, :2 * H2], bi_f[:, 2 * H2:]], axis=1)
    bh_f_n = bh_f[:, 2 * H2:]
    bi_b_fold = jnp.concatenate(
        [bi_b[:, :2 * H2] + bh_b[:, :2 * H2], bi_b[:, 2 * H2:]], axis=1)
    bh_b_n = bh_b[:, 2 * H2:]

    # one lane-dense (Dw, 128) input weight: [fused GRU wi | fused attn W1]
    att_w1 = jnp.concatenate([p['pie_w1'], p['unc_w1']], axis=1)   # (Dw, 2*D_H)
    in_w = jnp.concatenate([wi_f, att_w1], axis=1).astype(jnp.bfloat16)
    in_bias = jnp.concatenate(
        [bi_f_fold, jnp.zeros((1, att_w1.shape[1]), jnp.float32)], axis=1)

    zw2 = jnp.zeros_like(p['pie_w2'])
    att_w2 = jnp.concatenate(
        [jnp.concatenate([p['pie_w2'], zw2], axis=1),
         jnp.concatenate([zw2, p['unc_w2']], axis=1)],
        axis=0).astype(jnp.bfloat16)                               # (2*D_H, 2)

    zfc = jnp.zeros_like(p['pie_fcw'])
    fc_w = jnp.concatenate(
        [jnp.concatenate([p['pie_fcw'], zfc], axis=1),
         jnp.concatenate([zfc, p['unc_fcw']], axis=1)],
        axis=0).astype(jnp.bfloat16)                               # (2*Dw, 2*E)
    fc_b = jnp.concatenate([p['pie_fcb'], p['unc_fcb']], axis=1)   # (1, 2*E)

    # pack all seven (1, N) constants into one lane-dense (8, 128) slab
    def pad128(x):
        pad = OUT_W - x.shape[1]
        if pad == 0:
            return x
        return jnp.concatenate([x, jnp.zeros((1, pad), jnp.float32)], axis=1)

    bias_slab = jnp.concatenate(
        [pad128(in_bias), pad128(bi_b_fold), pad128(bh_f_n), pad128(bh_b_n),
         pad128(fc_b), pad128(p['ln_g']), pad128(p['ln_b']),
         jnp.zeros((1, OUT_W), jnp.float32)],
        axis=0)                                                    # (8, 128)

    tile_map = lambda i: (i, 0)
    full_map = lambda i: (0, 0)

    in_specs = [
        pl.BlockSpec((LBT, WORD_DIM), tile_map),     # wemb slab (bf16)
        pl.BlockSpec((BT, 1), tile_map),             # lengths (int32)
        pl.BlockSpec((BT, WORD_DIM), tile_map),      # x at lengths-1 (bf16)
        pl.BlockSpec(in_w.shape, full_map),
        pl.BlockSpec(wh_f.shape, full_map),
        pl.BlockSpec(wi_b.shape, full_map),
        pl.BlockSpec(att_w2.shape, full_map),
        pl.BlockSpec(fc_w.shape, full_map),
        pl.BlockSpec(bias_slab.shape, full_map),
    ]

    out = pl.pallas_call(
        encoder_text_kernel,
        out_shape=jax.ShapeDtypeStruct((Bsz, OUT_W), jnp.float32),
        grid=(nt,),
        in_specs=in_specs,
        out_specs=pl.BlockSpec((BT, OUT_W), tile_map),
        compiler_params=pltpu.CompilerParams(
            dimension_semantics=("parallel",)),      # only matters if nt > 1
    )(slab, len_col, x_last, in_w, wh_f, wi_b, att_w2, fc_w, bias_slab)

    return {
        'embedding': out[:, :EMBED_DIM],
        'logsigma': out[:, EMBED_DIM:2 * EMBED_DIM],
        'embedding_no_attn': out[:, 2 * EMBED_DIM:3 * EMBED_DIM],
    }


# ---------------------- deterministic parameter init -------------------------
def init_params(key):
    keys = iter(jax.random.split(key, 24))

    def rn(shape, scale=0.1):
        return (scale * jax.random.normal(next(keys), shape)).astype(jnp.float32)

    def gru(prefix):
        # stacked [forward, backward]; weights stored transposed (in, out)
        return {
            f'{prefix}_wi': rn((2, WORD_DIM, 3 * HID)),
            f'{prefix}_wh': rn((2, HID, 3 * HID)),
            f'{prefix}_bi': rn((2, 1, 3 * HID)),
            f'{prefix}_bh': rn((2, 1, 3 * HID)),
        }

    p = {'embed': rn((VOCAB, WORD_DIM), 1.0)}
    p.update(gru('g1'))          # self.rnn
    p.update(gru('g2'))          # uncertain_net.rnn
    p.update({
        'pie_w1': rn((WORD_DIM, D_H)),      # attention.w_1 (no bias)
        'pie_w2': rn((D_H, NUM_EMBEDS)),    # attention.w_2 (no bias)
        'pie_fcw': rn((WORD_DIM, EMBED_DIM)),
        'pie_fcb': rn((1, EMBED_DIM)),
        'ln_g': jnp.ones((1, EMBED_DIM), jnp.float32),
        'ln_b': jnp.zeros((1, EMBED_DIM), jnp.float32),
        'unc_w1': rn((WORD_DIM, D_H)),
        'unc_w2': rn((D_H, NUM_EMBEDS)),
        'unc_fcw': rn((WORD_DIM, EMBED_DIM)),
        'unc_fcb': rn((1, EMBED_DIM)),
    })
    return p


# --------------------------- pure-JAX reference (f32) -------------------------
def reference_forward(tokens, lengths, p):
    Bsz, Lseq = tokens.shape
    wemb = p['embed'][tokens].astype(jnp.float32)               # (B, L, Dw)
    pos = jnp.arange(Lseq)
    valid = (pos[None, :] < lengths[:, None]).astype(jnp.float32)   # (B, L)

    def run_bigru(wi, wh, bi, bh):
        def fwd(h, inp):
            x_t, mk = inp
            h_new = _gru_step(h, x_t, wi[0], wh[0], bi[0], bh[0], HID)
            h = mk[:, None] * h_new + (1.0 - mk[:, None]) * h
            return h, None
        h_f, _ = lax.scan(fwd, jnp.zeros((Bsz, HID), jnp.float32),
                          (jnp.transpose(wemb, (1, 0, 2)), valid.T))
        x_last = wemb[jnp.arange(Bsz), lengths - 1]
        h_b = _gru_step(jnp.zeros((Bsz, HID), jnp.float32), x_last,
                        wi[1], wh[1], bi[1], bh[1], HID)
        return jnp.concatenate([h_f, h_b], axis=-1)

    def attn(w1, w2):
        h = jnp.tanh(wemb @ w1)
        logit = (h @ w2)[..., 0]
        logit = jnp.where(valid > 0.5, logit, -jnp.inf)
        a = jax.nn.softmax(logit, axis=1)
        return jnp.einsum('bl,bld->bd', a, wemb)

    no_attn = run_bigru(p['g1_wi'], p['g1_wh'], p['g1_bi'], p['g1_bh'])
    resid = jax.nn.sigmoid(attn(p['pie_w1'], p['pie_w2']) @ p['pie_fcw']
                           + p['pie_fcb'])
    y = no_attn + resid
    mu = y.mean(-1, keepdims=True)
    var = ((y - mu) ** 2).mean(-1, keepdims=True)
    emb = (y - mu) / jnp.sqrt(var + LN_EPS) * p['ln_g'] + p['ln_b']
    resid_u = attn(p['unc_w1'], p['unc_w2'])
    rnn2 = run_bigru(p['g2_wi'], p['g2_wh'], p['g2_bi'], p['g2_bh'])
    logsig = resid_u @ p['unc_fcw'] + p['unc_fcb'] + rnn2
    return emb, logsig, no_attn


if __name__ == "__main__":
    key = jax.random.PRNGKey(0)
    pkey, tkey, lkey = jax.random.split(key, 3)
    params = init_params(pkey)
    tokens = jax.random.randint(tkey, (B, L), 0, VOCAB, dtype=jnp.int32)
    lengths = jax.random.randint(lkey, (B,), 1, L + 1, dtype=jnp.int32)
    lengths = lengths.at[0].set(L)   # ensure the max length is present

    out = encoder_text_forward(tokens, lengths, params)
    jax.block_until_ready(out)

    ref_emb, ref_ls, ref_na = reference_forward(tokens, lengths, params)
    assert out['embedding'].shape == (B, EMBED_DIM)
    assert out['logsigma'].shape == (B, EMBED_DIM)
    assert out['embedding_no_attn'].shape == (B, EMBED_DIM)
    # bf16 MXU operands / bf16 wemb slab (f32 accumulation) vs f32 reference.
    assert jnp.allclose(out['embedding'], ref_emb, rtol=2e-2, atol=2e-2)
    assert jnp.allclose(out['logsigma'], ref_ls, rtol=2e-2, atol=2e-2)
    assert jnp.allclose(out['embedding_no_attn'], ref_na, rtol=2e-2, atol=2e-2)
    print("KERNEL_OK")
</pallas_src>

<mosaic_0001>
module attributes {stable_mosaic.version = 11 : i64} {
  func.func @encoder_text_kernel(%arg0: i32, %arg1: memref<128x32xbf16, #tpu.memory_space<vmem>>, %arg2: memref<16x1xi32, #tpu.memory_space<vmem>>, %arg3: memref<16x32xbf16, #tpu.memory_space<vmem>>, %arg4: memref<32x128xbf16, #tpu.memory_space<vmem>>, %arg5: memref<32x96xbf16, #tpu.memory_space<vmem>>, %arg6: memref<32x96xbf16, #tpu.memory_space<vmem>>, %arg7: memref<32x2xbf16, #tpu.memory_space<vmem>>, %arg8: memref<64x64xbf16, #tpu.memory_space<vmem>>, %arg9: memref<8x128xf32, #tpu.memory_space<vmem>>, %arg10: memref<16x128xf32, #tpu.memory_space<vmem>>) attributes {dimension_semantics = [#tpu.dimension_semantics<parallel>], iteration_bounds = array<i64: 1>, scalar_prefetch = 0 : i64, scratch_operands = 0 : i64, tpu.core_type = #tpu.core_type<tc>, window_params = [{transform_indices = @transform_0, window_bounds = array<i64: 128, 32>}, {transform_indices = @transform_1, window_bounds = array<i64: 16, 1>}, {transform_indices = @transform_2, window_bounds = array<i64: 16, 32>}, {pipeline_mode = #tpu.pipeline_mode<synchronous>, transform_indices = @transform_3, window_bounds = array<i64: 32, 128>}, {pipeline_mode = #tpu.pipeline_mode<synchronous>, transform_indices = @transform_4, window_bounds = array<i64: 32, 96>}, {pipeline_mode = #tpu.pipeline_mode<synchronous>, transform_indices = @transform_5, window_bounds = array<i64: 32, 96>}, {pipeline_mode = #tpu.pipeline_mode<synchronous>, transform_indices = @transform_6, window_bounds = array<i64: 32, 2>}, {pipeline_mode = #tpu.pipeline_mode<synchronous>, transform_indices = @transform_7, window_bounds = array<i64: 64, 64>}, {pipeline_mode = #tpu.pipeline_mode<synchronous>, transform_indices = @transform_8, window_bounds = array<i64: 8, 128>}, {transform_indices = @transform_9, window_bounds = array<i64: 16, 128>}]} {
    %c0 = arith.constant 0 : index
    %c0_0 = arith.constant 0 : index
    %0 = vector.load %arg9[%c0, %c0_0] : memref<8x128xf32, #tpu.memory_space<vmem>>, vector<8x128xf32>
    %1 = vector.extract_strided_slice %0 {offsets = [0, 0], sizes = [1, 128], strides = [1, 1]} : vector<8x128xf32> to vector<1x128xf32>
    %2 = vector.extract_strided_slice %0 {offsets = [1, 0], sizes = [1, 96], strides = [1, 1]} : vector<8x128xf32> to vector<1x96xf32>
    %3 = vector.extract_strided_slice %0 {offsets = [2, 0], sizes = [1, 32], strides = [1, 1]} : vector<8x128xf32> to vector<1x32xf32>
    %4 = vector.extract_strided_slice %0 {offsets = [3, 0], sizes = [1, 32], strides = [1, 1]} : vector<8x128xf32> to vector<1x32xf32>
    %5 = vector.extract_strided_slice %0 {offsets = [4, 0], sizes = [1, 64], strides = [1, 1]} : vector<8x128xf32> to vector<1x64xf32>
    %6 = vector.extract_strided_slice %0 {offsets = [5, 0], sizes = [1, 32], strides = [1, 1]} : vector<8x128xf32> to vector<1x32xf32>
    %7 = vector.extract_strided_slice %0 {offsets = [6, 0], sizes = [1, 32], strides = [1, 1]} : vector<8x128xf32> to vector<1x32xf32>
    %c0_1 = arith.constant 0 : index
    %c0_2 = arith.constant 0 : index
    %8 = vector.load %arg1[%c0_1, %c0_2] : memref<128x32xbf16, #tpu.memory_space<vmem>>, vector<128x32xbf16>
    %c0_3 = arith.constant 0 : index
    %c0_4 = arith.constant 0 : index
    %9 = vector.load %arg2[%c0_3, %c0_4] : memref<16x1xi32, #tpu.memory_space<vmem>>, vector<16x1xi32>
    %c0_5 = arith.constant 0 : index
    %c0_6 = arith.constant 0 : index
    %10 = vector.load %arg4[%c0_5, %c0_6] : memref<32x128xbf16, #tpu.memory_space<vmem>>, vector<32x128xbf16>
    %cst = arith.constant dense<0.000000e+00> : vector<128x128xf32>
    %11 = tpu.matmul %8, %10, %cst {dimension_numbers = #tpu.dot_dimension_numbers<[1], [0], [0], [1], [0, 0, 1, 1], [], []>} : vector<128x32xbf16>, vector<32x128xbf16>, vector<128x128xf32> -> vector<128x128xf32>
    %12 = vector.broadcast %1 : vector<1x128xf32> to vector<128x128xf32>
    %13 = arith.addf %11, %12 : vector<128x128xf32>
    %14 = vector.extract_strided_slice %13 {offsets = [0, 0], sizes = [128, 96], strides = [1, 1]} : vector<128x128xf32> to vector<128x96xf32>
    %15 = vector.extract_strided_slice %13 {offsets = [0, 96], sizes = [128, 32], strides = [1, 1]} : vector<128x128xf32> to vector<128x32xf32>
    %16 = math.tanh %15 : vector<128x32xf32>
    %17 = arith.truncf %16 : vector<128x32xf32> to vector<128x32xbf16>
    %c0_7 = arith.constant 0 : index
    %c0_8 = arith.constant 0 : index
    %18 = vector.load %arg7[%c0_7, %c0_8] : memref<32x2xbf16, #tpu.memory_space<vmem>>, vector<32x2xbf16>
    %cst_9 = arith.constant dense<0.000000e+00> : vector<128x2xf32>
    %19 = tpu.matmul %17, %18, %cst_9 {dimension_numbers = #tpu.dot_dimension_numbers<[1], [0], [0], [1], [0, 0, 1, 1], [], []>} : vector<128x32xbf16>, vector<32x2xbf16>, vector<128x2xf32> -> vector<128x2xf32>
    %c0_i32 = arith.constant 0 : i32
    %20 = vector.broadcast %c0_i32 : i32 to vector<16x1xi32>
    %21 = arith.cmpi sgt, %9, %20 : vector<16x1xi32>
    %c1_i32 = arith.constant 1 : i32
    %22 = vector.broadcast %c1_i32 : i32 to vector<16x1xi32>
    %23 = arith.cmpi sgt, %9, %22 : vector<16x1xi32>
    %c2_i32 = arith.constant 2 : i32
    %24 = vector.broadcast %c2_i32 : i32 to vector<16x1xi32>
    %25 = arith.cmpi sgt, %9, %24 : vector<16x1xi32>
    %c3_i32 = arith.constant 3 : i32
    %26 = vector.broadcast %c3_i32 : i32 to vector<16x1xi32>
    %27 = arith.cmpi sgt, %9, %26 : vector<16x1xi32>
    %c4_i32 = arith.constant 4 : i32
    %28 = vector.broadcast %c4_i32 : i32 to vector<16x1xi32>
    %29 = arith.cmpi sgt, %9, %28 : vector<16x1xi32>
    %c5_i32 = arith.constant 5 : i32
    %30 = vector.broadcast %c5_i32 : i32 to vector<16x1xi32>
    %31 = arith.cmpi sgt, %9, %30 : vector<16x1xi32>
    %c6_i32 = arith.constant 6 : i32
    %32 = vector.broadcast %c6_i32 : i32 to vector<16x1xi32>
    %33 = arith.cmpi sgt, %9, %32 : vector<16x1xi32>
    %c7_i32 = arith.constant 7 : i32
    %34 = vector.broadcast %c7_i32 : i32 to vector<16x1xi32>
    %35 = arith.cmpi sgt, %9, %34 : vector<16x1xi32>
    %c0_10 = arith.constant 0 : index
    %c0_11 = arith.constant 0 : index
    %36 = vector.load %arg5[%c0_10, %c0_11] : memref<32x96xbf16, #tpu.memory_space<vmem>>, vector<32x96xbf16>
    %37 = vector.shape_cast %3 : vector<1x32xf32> to vector<1x32xf32>
    %38 = vector.broadcast %37 : vector<1x32xf32> to vector<16x32xf32>
    %cst_12 = arith.constant 0.000000e+00 : f32
    %39 = vector.broadcast %cst_12 : f32 to vector<16x32xf32>
    %40 = vector.extract_strided_slice %14 {offsets = [0, 0], sizes = [16, 96], strides = [1, 1]} : vector<128x96xf32> to vector<16x96xf32>
    %41 = arith.truncf %39 : vector<16x32xf32> to vector<16x32xbf16>
    %cst_13 = arith.constant dense<0.000000e+00> : vector<16x96xf32>
    %42 = tpu.matmul %41, %36, %cst_13 {dimension_numbers = #tpu.dot_dimension_numbers<[1], [0], [0], [1], [0, 0, 1, 1], [], []>} : vector<16x32xbf16>, vector<32x96xbf16>, vector<16x96xf32> -> vector<16x96xf32>
    %43 = vector.extract_strided_slice %40 {offsets = [0, 0], sizes = [16, 32], strides = [1, 1]} : vector<16x96xf32> to vector<16x32xf32>
    %44 = vector.extract_strided_slice %42 {offsets = [0, 0], sizes = [16, 32], strides = [1, 1]} : vector<16x96xf32> to vector<16x32xf32>
    %45 = arith.addf %43, %44 : vector<16x32xf32>
    %46 = arith.negf %45 : vector<16x32xf32>
    %47 = math.exp %46 : vector<16x32xf32>
    %cst_14 = arith.constant 1.000000e+00 : f32
    %48 = vector.broadcast %cst_14 : f32 to vector<16x32xf32>
    %49 = arith.addf %48, %47 : vector<16x32xf32>
    %50 = arith.divf %48, %49 : vector<16x32xf32>
    %51 = vector.extract_strided_slice %40 {offsets = [0, 32], sizes = [16, 32], strides = [1, 1]} : vector<16x96xf32> to vector<16x32xf32>
    %52 = vector.extract_strided_slice %42 {offsets = [0, 32], sizes = [16, 32], strides = [1, 1]} : vector<16x96xf32> to vector<16x32xf32>
    %53 = arith.addf %51, %52 : vector<16x32xf32>
    %54 = arith.negf %53 : vector<16x32xf32>
    %55 = math.exp %54 : vector<16x32xf32>
    %cst_15 = arith.constant 1.000000e+00 : f32
    %56 = vector.broadcast %cst_15 : f32 to vector<16x32xf32>
    %57 = arith.addf %56, %55 : vector<16x32xf32>
    %58 = arith.divf %56, %57 : vector<16x32xf32>
    %59 = vector.extract_strided_slice %40 {offsets = [0, 64], sizes = [16, 32], strides = [1, 1]} : vector<16x96xf32> to vector<16x32xf32>
    %60 = vector.extract_strided_slice %42 {offsets = [0, 64], sizes = [16, 32], strides = [1, 1]} : vector<16x96xf32> to vector<16x32xf32>
    %61 = arith.addf %60, %38 : vector<16x32xf32>
    %62 = arith.mulf %50, %61 : vector<16x32xf32>
    %63 = arith.addf %59, %62 : vector<16x32xf32>
    %64 = math.tanh %63 : vector<16x32xf32>
    %cst_16 = arith.constant 1.000000e+00 : f32
    %65 = vector.broadcast %cst_16 : f32 to vector<16x32xf32>
    %66 = arith.subf %65, %58 : vector<16x32xf32>
    %67 = arith.mulf %66, %64 : vector<16x32xf32>
    %68 = arith.mulf %58, %39 : vector<16x32xf32>
    %69 = arith.addf %67, %68 : vector<16x32xf32>
    %70 = vector.shape_cast %21 : vector<16x1xi1> to vector<16x1xi1>
    %71 = vector.broadcast %70 : vector<16x1xi1> to vector<16x32xi1>
    %72 = arith.select %71, %69, %39 : vector<16x32xi1>, vector<16x32xf32>
    %73 = vector.extract_strided_slice %14 {offsets = [16, 0], sizes = [16, 96], strides = [1, 1]} : vector<128x96xf32> to vector<16x96xf32>
    %74 = arith.truncf %72 : vector<16x32xf32> to vector<16x32xbf16>
    %cst_17 = arith.constant dense<0.000000e+00> : vector<16x96xf32>
    %75 = tpu.matmul %74, %36, %cst_17 {dimension_numbers = #tpu.dot_dimension_numbers<[1], [0], [0], [1], [0, 0, 1, 1], [], []>} : vector<16x32xbf16>, vector<32x96xbf16>, vector<16x96xf32> -> vector<16x96xf32>
    %76 = vector.extract_strided_slice %73 {offsets = [0, 0], sizes = [16, 32], strides = [1, 1]} : vector<16x96xf32> to vector<16x32xf32>
    %77 = vector.extract_strided_slice %75 {offsets = [0, 0], sizes = [16, 32], strides = [1, 1]} : vector<16x96xf32> to vector<16x32xf32>
    %78 = arith.addf %76, %77 : vector<16x32xf32>
    %79 = arith.negf %78 : vector<16x32xf32>
    %80 = math.exp %79 : vector<16x32xf32>
    %cst_18 = arith.constant 1.000000e+00 : f32
    %81 = vector.broadcast %cst_18 : f32 to vector<16x32xf32>
    %82 = arith.addf %81, %80 : vector<16x32xf32>
    %83 = arith.divf %81, %82 : vector<16x32xf32>
    %84 = vector.extract_strided_slice %73 {offsets = [0, 32], sizes = [16, 32], strides = [1, 1]} : vector<16x96xf32> to vector<16x32xf32>
    %85 = vector.extract_strided_slice %75 {offsets = [0, 32], sizes = [16, 32], strides = [1, 1]} : vector<16x96xf32> to vector<16x32xf32>
    %86 = arith.addf %84, %85 : vector<16x32xf32>
    %87 = arith.negf %86 : vector<16x32xf32>
    %88 = math.exp %87 : vector<16x32xf32>
    %cst_19 = arith.constant 1.000000e+00 : f32
    %89 = vector.broadcast %cst_19 : f32 to vector<16x32xf32>
    %90 = arith.addf %89, %88 : vector<16x32xf32>
    %91 = arith.divf %89, %90 : vector<16x32xf32>
    %92 = vector.extract_strided_slice %73 {offsets = [0, 64], sizes = [16, 32], strides = [1, 1]} : vector<16x96xf32> to vector<16x32xf32>
    %93 = vector.extract_strided_slice %75 {offsets = [0, 64], sizes = [16, 32], strides = [1, 1]} : vector<16x96xf32> to vector<16x32xf32>
    %94 = arith.addf %93, %38 : vector<16x32xf32>
    %95 = arith.mulf %83, %94 : vector<16x32xf32>
    %96 = arith.addf %92, %95 : vector<16x32xf32>
    %97 = math.tanh %96 : vector<16x32xf32>
    %cst_20 = arith.constant 1.000000e+00 : f32
    %98 = vector.broadcast %cst_20 : f32 to vector<16x32xf32>
    %99 = arith.subf %98, %91 : vector<16x32xf32>
    %100 = arith.mulf %99, %97 : vector<16x32xf32>
    %101 = arith.mulf %91, %72 : vector<16x32xf32>
    %102 = arith.addf %100, %101 : vector<16x32xf32>
    %103 = vector.shape_cast %23 : vector<16x1xi1> to vector<16x1xi1>
    %104 = vector.broadcast %103 : vector<16x1xi1> to vector<16x32xi1>
    %105 = arith.select %104, %102, %72 : vector<16x32xi1>, vector<16x32xf32>
    %106 = vector.extract_strided_slice %14 {offsets = [32, 0], sizes = [16, 96], strides = [1, 1]} : vector<128x96xf32> to vector<16x96xf32>
    %107 = arith.truncf %105 : vector<16x32xf32> to vector<16x32xbf16>
    %cst_21 = arith.constant dense<0.000000e+00> : vector<16x96xf32>
    %108 = tpu.matmul %107, %36, %cst_21 {dimension_numbers = #tpu.dot_dimension_numbers<[1], [0], [0], [1], [0, 0, 1, 1], [], []>} : vector<16x32xbf16>, vector<32x96xbf16>, vector<16x96xf32> -> vector<16x96xf32>
    %109 = vector.extract_strided_slice %106 {offsets = [0, 0], sizes = [16, 32], strides = [1, 1]} : vector<16x96xf32> to vector<16x32xf32>
    %110 = vector.extract_strided_slice %108 {offsets = [0, 0], sizes = [16, 32], strides = [1, 1]} : vector<16x96xf32> to vector<16x32xf32>
    %111 = arith.addf %109, %110 : vector<16x32xf32>
    %112 = arith.negf %111 : vector<16x32xf32>
    %113 = math.exp %112 : vector<16x32xf32>
    %cst_22 = arith.constant 1.000000e+00 : f32
    %114 = vector.broadcast %cst_22 : f32 to vector<16x32xf32>
    %115 = arith.addf %114, %113 : vector<16x32xf32>
    %116 = arith.divf %114, %115 : vector<16x32xf32>
    %117 = vector.extract_strided_slice %106 {offsets = [0, 32], sizes = [16, 32], strides = [1, 1]} : vector<16x96xf32> to vector<16x32xf32>
    %118 = vector.extract_strided_slice %108 {offsets = [0, 32], sizes = [16, 32], strides = [1, 1]} : vector<16x96xf32> to vector<16x32xf32>
    %119 = arith.addf %117, %118 : vector<16x32xf32>
    %120 = arith.negf %119 : vector<16x32xf32>
    %121 = math.exp %120 : vector<16x32xf32>
    %cst_23 = arith.constant 1.000000e+00 : f32
    %122 = vector.broadcast %cst_23 : f32 to vector<16x32xf32>
    %123 = arith.addf %122, %121 : vector<16x32xf32>
    %124 = arith.divf %122, %123 : vector<16x32xf32>
    %125 = vector.extract_strided_slice %106 {offsets = [0, 64], sizes = [16, 32], strides = [1, 1]} : vector<16x96xf32> to vector<16x32xf32>
    %126 = vector.extract_strided_slice %108 {offsets = [0, 64], sizes = [16, 32], strides = [1, 1]} : vector<16x96xf32> to vector<16x32xf32>
    %127 = arith.addf %126, %38 : vector<16x32xf32>
    %128 = arith.mulf %116, %127 : vector<16x32xf32>
    %129 = arith.addf %125, %128 : vector<16x32xf32>
    %130 = math.tanh %129 : vector<16x32xf32>
    %cst_24 = arith.constant 1.000000e+00 : f32
    %131 = vector.broadcast %cst_24 : f32 to vector<16x32xf32>
    %132 = arith.subf %131, %124 : vector<16x32xf32>
    %133 = arith.mulf %132, %130 : vector<16x32xf32>
    %134 = arith.mulf %124, %105 : vector<16x32xf32>
    %135 = arith.addf %133, %134 : vector<16x32xf32>
    %136 = vector.shape_cast %25 : vector<16x1xi1> to vector<16x1xi1>
    %137 = vector.broadcast %136 : vector<16x1xi1> to vector<16x32xi1>
    %138 = arith.select %137, %135, %105 : vector<16x32xi1>, vector<16x32xf32>
    %139 = vector.extract_strided_slice %14 {offsets = [48, 0], sizes = [16, 96], strides = [1, 1]} : vector<128x96xf32> to vector<16x96xf32>
    %140 = arith.truncf %138 : vector<16x32xf32> to vector<16x32xbf16>
    %cst_25 = arith.constant dense<0.000000e+00> : vector<16x96xf32>
    %141 = tpu.matmul %140, %36, %cst_25 {dimension_numbers = #tpu.dot_dimension_numbers<[1], [0], [0], [1], [0, 0, 1, 1], [], []>} : vector<16x32xbf16>, vector<32x96xbf16>, vector<16x96xf32> -> vector<16x96xf32>
    %142 = vector.extract_strided_slice %139 {offsets = [0, 0], sizes = [16, 32], strides = [1, 1]} : vector<16x96xf32> to vector<16x32xf32>
    %143 = vector.extract_strided_slice %141 {offsets = [0, 0], sizes = [16, 32], strides = [1, 1]} : vector<16x96xf32> to vector<16x32xf32>
    %144 = arith.addf %142, %143 : vector<16x32xf32>
    %145 = arith.negf %144 : vector<16x32xf32>
    %146 = math.exp %145 : vector<16x32xf32>
    %cst_26 = arith.constant 1.000000e+00 : f32
    %147 = vector.broadcast %cst_26 : f32 to vector<16x32xf32>
    %148 = arith.addf %147, %146 : vector<16x32xf32>
    %149 = arith.divf %147, %148 : vector<16x32xf32>
    %150 = vector.extract_strided_slice %139 {offsets = [0, 32], sizes = [16, 32], strides = [1, 1]} : vector<16x96xf32> to vector<16x32xf32>
    %151 = vector.extract_strided_slice %141 {offsets = [0, 32], sizes = [16, 32], strides = [1, 1]} : vector<16x96xf32> to vector<16x32xf32>
    %152 = arith.addf %150, %151 : vector<16x32xf32>
    %153 = arith.negf %152 : vector<16x32xf32>
    %154 = math.exp %153 : vector<16x32xf32>
    %cst_27 = arith.constant 1.000000e+00 : f32
    %155 = vector.broadcast %cst_27 : f32 to vector<16x32xf32>
    %156 = arith.addf %155, %154 : vector<16x32xf32>
    %157 = arith.divf %155, %156 : vector<16x32xf32>
    %158 = vector.extract_strided_slice %139 {offsets = [0, 64], sizes = [16, 32], strides = [1, 1]} : vector<16x96xf32> to vector<16x32xf32>
    %159 = vector.extract_strided_slice %141 {offsets = [0, 64], sizes = [16, 32], strides = [1, 1]} : vector<16x96xf32> to vector<16x32xf32>
    %160 = arith.addf %159, %38 : vector<16x32xf32>
    %161 = arith.mulf %149, %160 : vector<16x32xf32>
    %162 = arith.addf %158, %161 : vector<16x32xf32>
    %163 = math.tanh %162 : vector<16x32xf32>
    %cst_28 = arith.constant 1.000000e+00 : f32
    %164 = vector.broadcast %cst_28 : f32 to vector<16x32xf32>
    %165 = arith.subf %164, %157 : vector<16x32xf32>
    %166 = arith.mulf %165, %163 : vector<16x32xf32>
    %167 = arith.mulf %157, %138 : vector<16x32xf32>
    %168 = arith.addf %166, %167 : vector<16x32xf32>
    %169 = vector.shape_cast %27 : vector<16x1xi1> to vector<16x1xi1>
    %170 = vector.broadcast %169 : vector<16x1xi1> to vector<16x32xi1>
    %171 = arith.select %170, %168, %138 : vector<16x32xi1>, vector<16x32xf32>
    %172 = vector.extract_strided_slice %14 {offsets = [64, 0], sizes = [16, 96], strides = [1, 1]} : vector<128x96xf32> to vector<16x96xf32>
    %173 = arith.truncf %171 : vector<16x32xf32> to vector<16x32xbf16>
    %cst_29 = arith.constant dense<0.000000e+00> : vector<16x96xf32>
    %174 = tpu.matmul %173, %36, %cst_29 {dimension_numbers = #tpu.dot_dimension_numbers<[1], [0], [0], [1], [0, 0, 1, 1], [], []>} : vector<16x32xbf16>, vector<32x96xbf16>, vector<16x96xf32> -> vector<16x96xf32>
    %175 = vector.extract_strided_slice %172 {offsets = [0, 0], sizes = [16, 32], strides = [1, 1]} : vector<16x96xf32> to vector<16x32xf32>
    %176 = vector.extract_strided_slice %174 {offsets = [0, 0], sizes = [16, 32], strides = [1, 1]} : vector<16x96xf32> to vector<16x32xf32>
    %177 = arith.addf %175, %176 : vector<16x32xf32>
    %178 = arith.negf %177 : vector<16x32xf32>
    %179 = math.exp %178 : vector<16x32xf32>
    %cst_30 = arith.constant 1.000000e+00 : f32
    %180 = vector.broadcast %cst_30 : f32 to vector<16x32xf32>
    %181 = arith.addf %180, %179 : vector<16x32xf32>
    %182 = arith.divf %180, %181 : vector<16x32xf32>
    %183 = vector.extract_strided_slice %172 {offsets = [0, 32], sizes = [16, 32], strides = [1, 1]} : vector<16x96xf32> to vector<16x32xf32>
    %184 = vector.extract_strided_slice %174 {offsets = [0, 32], sizes = [16, 32], strides = [1, 1]} : vector<16x96xf32> to vector<16x32xf32>
    %185 = arith.addf %183, %184 : vector<16x32xf32>
    %186 = arith.negf %185 : vector<16x32xf32>
    %187 = math.exp %186 : vector<16x32xf32>
    %cst_31 = arith.constant 1.000000e+00 : f32
    %188 = vector.broadcast %cst_31 : f32 to vector<16x32xf32>
    %189 = arith.addf %188, %187 : vector<16x32xf32>
    %190 = arith.divf %188, %189 : vector<16x32xf32>
    %191 = vector.extract_strided_slice %172 {offsets = [0, 64], sizes = [16, 32], strides = [1, 1]} : vector<16x96xf32> to vector<16x32xf32>
    %192 = vector.extract_strided_slice %174 {offsets = [0, 64], sizes = [16, 32], strides = [1, 1]} : vector<16x96xf32> to vector<16x32xf32>
    %193 = arith.addf %192, %38 : vector<16x32xf32>
    %194 = arith.mulf %182, %193 : vector<16x32xf32>
    %195 = arith.addf %191, %194 : vector<16x32xf32>
    %196 = math.tanh %195 : vector<16x32xf32>
    %cst_32 = arith.constant 1.000000e+00 : f32
    %197 = vector.broadcast %cst_32 : f32 to vector<16x32xf32>
    %198 = arith.subf %197, %190 : vector<16x32xf32>
    %199 = arith.mulf %198, %196 : vector<16x32xf32>
    %200 = arith.mulf %190, %171 : vector<16x32xf32>
    %201 = arith.addf %199, %200 : vector<16x32xf32>
    %202 = vector.shape_cast %29 : vector<16x1xi1> to vector<16x1xi1>
    %203 = vector.broadcast %202 : vector<16x1xi1> to vector<16x32xi1>
    %204 = arith.select %203, %201, %171 : vector<16x32xi1>, vector<16x32xf32>
    %205 = vector.extract_strided_slice %14 {offsets = [80, 0], sizes = [16, 96], strides = [1, 1]} : vector<128x96xf32> to vector<16x96xf32>
    %206 = arith.truncf %204 : vector<16x32xf32> to vector<16x32xbf16>
    %cst_33 = arith.constant dense<0.000000e+00> : vector<16x96xf32>
    %207 = tpu.matmul %206, %36, %cst_33 {dimension_numbers = #tpu.dot_dimension_numbers<[1], [0], [0], [1], [0, 0, 1, 1], [], []>} : vector<16x32xbf16>, vector<32x96xbf16>, vector<16x96xf32> -> vector<16x96xf32>
    %208 = vector.extract_strided_slice %205 {offsets = [0, 0], sizes = [16, 32], strides = [1, 1]} : vector<16x96xf32> to vector<16x32xf32>
    %209 = vector.extract_strided_slice %207 {offsets = [0, 0], sizes = [16, 32], strides = [1, 1]} : vector<16x96xf32> to vector<16x32xf32>
    %210 = arith.addf %208, %209 : vector<16x32xf32>
    %211 = arith.negf %210 : vector<16x32xf32>
    %212 = math.exp %211 : vector<16x32xf32>
    %cst_34 = arith.constant 1.000000e+00 : f32
    %213 = vector.broadcast %cst_34 : f32 to vector<16x32xf32>
    %214 = arith.addf %213, %212 : vector<16x32xf32>
    %215 = arith.divf %213, %214 : vector<16x32xf32>
    %216 = vector.extract_strided_slice %205 {offsets = [0, 32], sizes = [16, 32], strides = [1, 1]} : vector<16x96xf32> to vector<16x32xf32>
    %217 = vector.extract_strided_slice %207 {offsets = [0, 32], sizes = [16, 32], strides = [1, 1]} : vector<16x96xf32> to vector<16x32xf32>
    %218 = arith.addf %216, %217 : vector<16x32xf32>
    %219 = arith.negf %218 : vector<16x32xf32>
    %220 = math.exp %219 : vector<16x32xf32>
    %cst_35 = arith.constant 1.000000e+00 : f32
    %221 = vector.broadcast %cst_35 : f32 to vector<16x32xf32>
    %222 = arith.addf %221, %220 : vector<16x32xf32>
    %223 = arith.divf %221, %222 : vector<16x32xf32>
    %224 = vector.extract_strided_slice %205 {offsets = [0, 64], sizes = [16, 32], strides = [1, 1]} : vector<16x96xf32> to vector<16x32xf32>
    %225 = vector.extract_strided_slice %207 {offsets = [0, 64], sizes = [16, 32], strides = [1, 1]} : vector<16x96xf32> to vector<16x32xf32>
    %226 = arith.addf %225, %38 : vector<16x32xf32>
    %227 = arith.mulf %215, %226 : vector<16x32xf32>
    %228 = arith.addf %224, %227 : vector<16x32xf32>
    %229 = math.tanh %228 : vector<16x32xf32>
    %cst_36 = arith.constant 1.000000e+00 : f32
    %230 = vector.broadcast %cst_36 : f32 to vector<16x32xf32>
    %231 = arith.subf %230, %223 : vector<16x32xf32>
    %232 = arith.mulf %231, %229 : vector<16x32xf32>
    %233 = arith.mulf %223, %204 : vector<16x32xf32>
    %234 = arith.addf %232, %233 : vector<16x32xf32>
    %235 = vector.shape_cast %31 : vector<16x1xi1> to vector<16x1xi1>
    %236 = vector.broadcast %235 : vector<16x1xi1> to vector<16x32xi1>
    %237 = arith.select %236, %234, %204 : vector<16x32xi1>, vector<16x32xf32>
    %238 = vector.extract_strided_slice %14 {offsets = [96, 0], sizes = [16, 96], strides = [1, 1]} : vector<128x96xf32> to vector<16x96xf32>
    %239 = arith.truncf %237 : vector<16x32xf32> to vector<16x32xbf16>
    %cst_37 = arith.constant dense<0.000000e+00> : vector<16x96xf32>
    %240 = tpu.matmul %239, %36, %cst_37 {dimension_numbers = #tpu.dot_dimension_numbers<[1], [0], [0], [1], [0, 0, 1, 1], [], []>} : vector<16x32xbf16>, vector<32x96xbf16>, vector<16x96xf32> -> vector<16x96xf32>
    %241 = vector.extract_strided_slice %238 {offsets = [0, 0], sizes = [16, 32], strides = [1, 1]} : vector<16x96xf32> to vector<16x32xf32>
    %242 = vector.extract_strided_slice %240 {offsets = [0, 0], sizes = [16, 32], strides = [1, 1]} : vector<16x96xf32> to vector<16x32xf32>
    %243 = arith.addf %241, %242 : vector<16x32xf32>
    %244 = arith.negf %243 : vector<16x32xf32>
    %245 = math.exp %244 : vector<16x32xf32>
    %cst_38 = arith.constant 1.000000e+00 : f32
    %246 = vector.broadcast %cst_38 : f32 to vector<16x32xf32>
    %247 = arith.addf %246, %245 : vector<16x32xf32>
    %248 = arith.divf %246, %247 : vector<16x32xf32>
    %249 = vector.extract_strided_slice %238 {offsets = [0, 32], sizes = [16, 32], strides = [1, 1]} : vector<16x96xf32> to vector<16x32xf32>
    %250 = vector.extract_strided_slice %240 {offsets = [0, 32], sizes = [16, 32], strides = [1, 1]} : vector<16x96xf32> to vector<16x32xf32>
    %251 = arith.addf %249, %250 : vector<16x32xf32>
    %252 = arith.negf %251 : vector<16x32xf32>
    %253 = math.exp %252 : vector<16x32xf32>
    %cst_39 = arith.constant 1.000000e+00 : f32
    %254 = vector.broadcast %cst_39 : f32 to vector<16x32xf32>
    %255 = arith.addf %254, %253 : vector<16x32xf32>
    %256 = arith.divf %254, %255 : vector<16x32xf32>
    %257 = vector.extract_strided_slice %238 {offsets = [0, 64], sizes = [16, 32], strides = [1, 1]} : vector<16x96xf32> to vector<16x32xf32>
    %258 = vector.extract_strided_slice %240 {offsets = [0, 64], sizes = [16, 32], strides = [1, 1]} : vector<16x96xf32> to vector<16x32xf32>
    %259 = arith.addf %258, %38 : vector<16x32xf32>
    %260 = arith.mulf %248, %259 : vector<16x32xf32>
    %261 = arith.addf %257, %260 : vector<16x32xf32>
    %262 = math.tanh %261 : vector<16x32xf32>
    %cst_40 = arith.constant 1.000000e+00 : f32
    %263 = vector.broadcast %cst_40 : f32 to vector<16x32xf32>
    %264 = arith.subf %263, %256 : vector<16x32xf32>
    %265 = arith.mulf %264, %262 : vector<16x32xf32>
    %266 = arith.mulf %256, %237 : vector<16x32xf32>
    %267 = arith.addf %265, %266 : vector<16x32xf32>
    %268 = vector.shape_cast %33 : vector<16x1xi1> to vector<16x1xi1>
    %269 = vector.broadcast %268 : vector<16x1xi1> to vector<16x32xi1>
    %270 = arith.select %269, %267, %237 : vector<16x32xi1>, vector<16x32xf32>
    %271 = vector.extract_strided_slice %14 {offsets = [112, 0], sizes = [16, 96], strides = [1, 1]} : vector<128x96xf32> to vector<16x96xf32>
    %272 = arith.truncf %270 : vector<16x32xf32> to vector<16x32xbf16>
    %cst_41 = arith.constant dense<0.000000e+00> : vector<16x96xf32>
    %273 = tpu.matmul %272, %36, %cst_41 {dimension_numbers = #tpu.dot_dimension_numbers<[1], [0], [0], [1], [0, 0, 1, 1], [], []>} : vector<16x32xbf16>, vector<32x96xbf16>, vector<16x96xf32> -> vector<16x96xf32>
    %274 = vector.extract_strided_slice %271 {offsets = [0, 0], sizes = [16, 32], strides = [1, 1]} : vector<16x96xf32> to vector<16x32xf32>
    %275 = vector.extract_strided_slice %273 {offsets = [0, 0], sizes = [16, 32], strides = [1, 1]} : vector<16x96xf32> to vector<16x32xf32>
    %276 = arith.addf %274, %275 : vector<16x32xf32>
    %277 = arith.negf %276 : vector<16x32xf32>
    %278 = math.exp %277 : vector<16x32xf32>
    %cst_42 = arith.constant 1.000000e+00 : f32
    %279 = vector.broadcast %cst_42 : f32 to vector<16x32xf32>
    %280 = arith.addf %279, %278 : vector<16x32xf32>
    %281 = arith.divf %279, %280 : vector<16x32xf32>
    %282 = vector.extract_strided_slice %271 {offsets = [0, 32], sizes = [16, 32], strides = [1, 1]} : vector<16x96xf32> to vector<16x32xf32>
    %283 = vector.extract_strided_slice %273 {offsets = [0, 32], sizes = [16, 32], strides = [1, 1]} : vector<16x96xf32> to vector<16x32xf32>
    %284 = arith.addf %282, %283 : vector<16x32xf32>
    %285 = arith.negf %284 : vector<16x32xf32>
    %286 = math.exp %285 : vector<16x32xf32>
    %cst_43 = arith.constant 1.000000e+00 : f32
    %287 = vector.broadcast %cst_43 : f32 to vector<16x32xf32>
    %288 = arith.addf %287, %286 : vector<16x32xf32>
    %289 = arith.divf %287, %288 : vector<16x32xf32>
    %290 = vector.extract_strided_slice %271 {offsets = [0, 64], sizes = [16, 32], strides = [1, 1]} : vector<16x96xf32> to vector<16x32xf32>
    %291 = vector.extract_strided_slice %273 {offsets = [0, 64], sizes = [16, 32], strides = [1, 1]} : vector<16x96xf32> to vector<16x32xf32>
    %292 = arith.addf %291, %38 : vector<16x32xf32>
    %293 = arith.mulf %281, %292 : vector<16x32xf32>
    %294 = arith.addf %290, %293 : vector<16x32xf32>
    %295 = math.tanh %294 : vector<16x32xf32>
    %cst_44 = arith.constant 1.000000e+00 : f32
    %296 = vector.broadcast %cst_44 : f32 to vector<16x32xf32>
    %297 = arith.subf %296, %289 : vector<16x32xf32>
    %298 = arith.mulf %297, %295 : vector<16x32xf32>
    %299 = arith.mulf %289, %270 : vector<16x32xf32>
    %300 = arith.addf %298, %299 : vector<16x32xf32>
    %301 = vector.shape_cast %35 : vector<16x1xi1> to vector<16x1xi1>
    %302 = vector.broadcast %301 : vector<16x1xi1> to vector<16x32xi1>
    %303 = arith.select %302, %300, %270 : vector<16x32xi1>, vector<16x32xf32>
    %c0_45 = arith.constant 0 : index
    %c0_46 = arith.constant 0 : index
    %304 = vector.load %arg3[%c0_45, %c0_46] : memref<16x32xbf16, #tpu.memory_space<vmem>>, vector<16x32xbf16>
    %c0_47 = arith.constant 0 : index
    %c0_48 = arith.constant 0 : index
    %305 = vector.load %arg6[%c0_47, %c0_48] : memref<32x96xbf16, #tpu.memory_space<vmem>>, vector<32x96xbf16>
    %cst_49 = arith.constant dense<0.000000e+00> : vector<16x96xf32>
    %306 = tpu.matmul %304, %305, %cst_49 {dimension_numbers = #tpu.dot_dimension_numbers<[1], [0], [0], [1], [0, 0, 1, 1], [], []>} : vector<16x32xbf16>, vector<32x96xbf16>, vector<16x96xf32> -> vector<16x96xf32>
    %307 = vector.broadcast %2 : vector<1x96xf32> to vector<16x96xf32>
    %308 = arith.addf %306, %307 : vector<16x96xf32>
    %309 = vector.extract_strided_slice %308 {offsets = [0, 0], sizes = [16, 32], strides = [1, 1]} : vector<16x96xf32> to vector<16x32xf32>
    %310 = arith.negf %309 : vector<16x32xf32>
    %311 = math.exp %310 : vector<16x32xf32>
    %cst_50 = arith.constant 1.000000e+00 : f32
    %312 = vector.broadcast %cst_50 : f32 to vector<16x32xf32>
    %313 = arith.addf %312, %311 : vector<16x32xf32>
    %314 = arith.divf %312, %313 : vector<16x32xf32>
    %315 = vector.extract_strided_slice %308 {offsets = [0, 32], sizes = [16, 32], strides = [1, 1]} : vector<16x96xf32> to vector<16x32xf32>
    %316 = arith.negf %315 : vector<16x32xf32>
    %317 = math.exp %316 : vector<16x32xf32>
    %cst_51 = arith.constant 1.000000e+00 : f32
    %318 = vector.broadcast %cst_51 : f32 to vector<16x32xf32>
    %319 = arith.addf %318, %317 : vector<16x32xf32>
    %320 = arith.divf %318, %319 : vector<16x32xf32>
    %321 = vector.extract_strided_slice %308 {offsets = [0, 64], sizes = [16, 32], strides = [1, 1]} : vector<16x96xf32> to vector<16x32xf32>
    %322 = vector.broadcast %4 : vector<1x32xf32> to vector<16x32xf32>
    %323 = arith.mulf %314, %322 : vector<16x32xf32>
    %324 = arith.addf %321, %323 : vector<16x32xf32>
    %325 = math.tanh %324 : vector<16x32xf32>
    %cst_52 = arith.constant 1.000000e+00 : f32
    %326 = vector.broadcast %cst_52 : f32 to vector<16x32xf32>
    %327 = arith.subf %326, %320 : vector<16x32xf32>
    %328 = arith.mulf %327, %325 : vector<16x32xf32>
    %329 = vector.extract_strided_slice %303 {offsets = [0, 0], sizes = [16, 16], strides = [1, 1]} : vector<16x32xf32> to vector<16x16xf32>
    %330 = vector.extract_strided_slice %328 {offsets = [0, 0], sizes = [16, 16], strides = [1, 1]} : vector<16x32xf32> to vector<16x16xf32>
    %331 = tpu.concatenate %329, %330 in 1 : vector<16x16xf32>, vector<16x16xf32> -> vector<16x32xf32>
    %332 = vector.extract_strided_slice %303 {offsets = [0, 16], sizes = [16, 16], strides = [1, 1]} : vector<16x32xf32> to vector<16x16xf32>
    %333 = vector.extract_strided_slice %328 {offsets = [0, 16], sizes = [16, 16], strides = [1, 1]} : vector<16x32xf32> to vector<16x16xf32>
    %334 = tpu.concatenate %332, %333 in 1 : vector<16x16xf32>, vector<16x16xf32> -> vector<16x32xf32>
    %335 = vector.extract_strided_slice %19 {offsets = [0, 0], sizes = [16, 2], strides = [1, 1]} : vector<128x2xf32> to vector<16x2xf32>
    %cst_53 = arith.constant -1.000000e+30 : f32
    %336 = vector.shape_cast %21 : vector<16x1xi1> to vector<16x1xi1>
    %337 = vector.broadcast %336 : vector<16x1xi1> to vector<16x2xi1>
    %338 = vector.broadcast %cst_53 : f32 to vector<16x2xf32>
    %339 = arith.select %337, %335, %338 : vector<16x2xi1>, vector<16x2xf32>
    %340 = vector.extract_strided_slice %19 {offsets = [16, 0], sizes = [16, 2], strides = [1, 1]} : vector<128x2xf32> to vector<16x2xf32>
    %cst_54 = arith.constant -1.000000e+30 : f32
    %341 = vector.shape_cast %23 : vector<16x1xi1> to vector<16x1xi1>
    %342 = vector.broadcast %341 : vector<16x1xi1> to vector<16x2xi1>
    %343 = vector.broadcast %cst_54 : f32 to vector<16x2xf32>
    %344 = arith.select %342, %340, %343 : vector<16x2xi1>, vector<16x2xf32>
    %345 = arith.maximumf %339, %344 : vector<16x2xf32>
    %346 = vector.extract_strided_slice %19 {offsets = [32, 0], sizes = [16, 2], strides = [1, 1]} : vector<128x2xf32> to vector<16x2xf32>
    %cst_55 = arith.constant -1.000000e+30 : f32
    %347 = vector.shape_cast %25 : vector<16x1xi1> to vector<16x1xi1>
    %348 = vector.broadcast %347 : vector<16x1xi1> to vector<16x2xi1>
    %349 = vector.broadcast %cst_55 : f32 to vector<16x2xf32>
    %350 = arith.select %348, %346, %349 : vector<16x2xi1>, vector<16x2xf32>
    %351 = arith.maximumf %345, %350 : vector<16x2xf32>
    %352 = vector.extract_strided_slice %19 {offsets = [48, 0], sizes = [16, 2], strides = [1, 1]} : vector<128x2xf32> to vector<16x2xf32>
    %cst_56 = arith.constant -1.000000e+30 : f32
    %353 = vector.shape_cast %27 : vector<16x1xi1> to vector<16x1xi1>
    %354 = vector.broadcast %353 : vector<16x1xi1> to vector<16x2xi1>
    %355 = vector.broadcast %cst_56 : f32 to vector<16x2xf32>
    %356 = arith.select %354, %352, %355 : vector<16x2xi1>, vector<16x2xf32>
    %357 = arith.maximumf %351, %356 : vector<16x2xf32>
    %358 = vector.extract_strided_slice %19 {offsets = [64, 0], sizes = [16, 2], strides = [1, 1]} : vector<128x2xf32> to vector<16x2xf32>
    %cst_57 = arith.constant -1.000000e+30 : f32
    %359 = vector.shape_cast %29 : vector<16x1xi1> to vector<16x1xi1>
    %360 = vector.broadcast %359 : vector<16x1xi1> to vector<16x2xi1>
    %361 = vector.broadcast %cst_57 : f32 to vector<16x2xf32>
    %362 = arith.select %360, %358, %361 : vector<16x2xi1>, vector<16x2xf32>
    %363 = arith.maximumf %357, %362 : vector<16x2xf32>
    %364 = vector.extract_strided_slice %19 {offsets = [80, 0], sizes = [16, 2], strides = [1, 1]} : vector<128x2xf32> to vector<16x2xf32>
    %cst_58 = arith.constant -1.000000e+30 : f32
    %365 = vector.shape_cast %31 : vector<16x1xi1> to vector<16x1xi1>
    %366 = vector.broadcast %365 : vector<16x1xi1> to vector<16x2xi1>
    %367 = vector.broadcast %cst_58 : f32 to vector<16x2xf32>
    %368 = arith.select %366, %364, %367 : vector<16x2xi1>, vector<16x2xf32>
    %369 = arith.maximumf %363, %368 : vector<16x2xf32>
    %370 = vector.extract_strided_slice %19 {offsets = [96, 0], sizes = [16, 2], strides = [1, 1]} : vector<128x2xf32> to vector<16x2xf32>
    %cst_59 = arith.constant -1.000000e+30 : f32
    %371 = vector.shape_cast %33 : vector<16x1xi1> to vector<16x1xi1>
    %372 = vector.broadcast %371 : vector<16x1xi1> to vector<16x2xi1>
    %373 = vector.broadcast %cst_59 : f32 to vector<16x2xf32>
    %374 = arith.select %372, %370, %373 : vector<16x2xi1>, vector<16x2xf32>
    %375 = arith.maximumf %369, %374 : vector<16x2xf32>
    %376 = vector.extract_strided_slice %19 {offsets = [112, 0], sizes = [16, 2], strides = [1, 1]} : vector<128x2xf32> to vector<16x2xf32>
    %cst_60 = arith.constant -1.000000e+30 : f32
    %377 = vector.shape_cast %35 : vector<16x1xi1> to vector<16x1xi1>
    %378 = vector.broadcast %377 : vector<16x1xi1> to vector<16x2xi1>
    %379 = vector.broadcast %cst_60 : f32 to vector<16x2xf32>
    %380 = arith.select %378, %376, %379 : vector<16x2xi1>, vector<16x2xf32>
    %381 = arith.maximumf %375, %380 : vector<16x2xf32>
    %382 = arith.extf %8 : vector<128x32xbf16> to vector<128x32xf32>
    %cst_61 = arith.constant 0.000000e+00 : f32
    %383 = vector.broadcast %cst_61 : f32 to vector<16x2xf32>
    %cst_62 = arith.constant 0.000000e+00 : f32
    %384 = vector.broadcast %cst_62 : f32 to vector<16x32xf32>
    %cst_63 = arith.constant 0.000000e+00 : f32
    %385 = vector.broadcast %cst_63 : f32 to vector<16x32xf32>
    %386 = arith.subf %339, %381 : vector<16x2xf32>
    %387 = math.exp %386 : vector<16x2xf32>
    %388 = arith.addf %383, %387 : vector<16x2xf32>
    %389 = vector.extract_strided_slice %382 {offsets = [0, 0], sizes = [16, 32], strides = [1, 1]} : vector<128x32xf32> to vector<16x32xf32>
    %390 = vector.extract_strided_slice %387 {offsets = [0, 0], sizes = [16, 1], strides = [1, 1]} : vector<16x2xf32> to vector<16x1xf32>
    %391 = vector.broadcast %390 : vector<16x1xf32> to vector<16x32xf32>
    %392 = arith.mulf %391, %389 : vector<16x32xf32>
    %393 = arith.addf %384, %392 : vector<16x32xf32>
    %394 = vector.extract_strided_slice %387 {offsets = [0, 1], sizes = [16, 1], strides = [1, 1]} : vector<16x2xf32> to vector<16x1xf32>
    %395 = vector.broadcast %394 : vector<16x1xf32> to vector<16x32xf32>
    %396 = arith.mulf %395, %389 : vector<16x32xf32>
    %397 = arith.addf %385, %396 : vector<16x32xf32>
    %398 = arith.subf %344, %381 : vector<16x2xf32>
    %399 = math.exp %398 : vector<16x2xf32>
    %400 = arith.addf %388, %399 : vector<16x2xf32>
    %401 = vector.extract_strided_slice %382 {offsets = [16, 0], sizes = [16, 32], strides = [1, 1]} : vector<128x32xf32> to vector<16x32xf32>
    %402 = vector.extract_strided_slice %399 {offsets = [0, 0], sizes = [16, 1], strides = [1, 1]} : vector<16x2xf32> to vector<16x1xf32>
    %403 = vector.broadcast %402 : vector<16x1xf32> to vector<16x32xf32>
    %404 = arith.mulf %403, %401 : vector<16x32xf32>
    %405 = arith.addf %393, %404 : vector<16x32xf32>
    %406 = vector.extract_strided_slice %399 {offsets = [0, 1], sizes = [16, 1], strides = [1, 1]} : vector<16x2xf32> to vector<16x1xf32>
    %407 = vector.broadcast %406 : vector<16x1xf32> to vector<16x32xf32>
    %408 = arith.mulf %407, %401 : vector<16x32xf32>
    %409 = arith.addf %397, %408 : vector<16x32xf32>
    %410 = arith.subf %350, %381 : vector<16x2xf32>
    %411 = math.exp %410 : vector<16x2xf32>
    %412 = arith.addf %400, %411 : vector<16x2xf32>
    %413 = vector.extract_strided_slice %382 {offsets = [32, 0], sizes = [16, 32], strides = [1, 1]} : vector<128x32xf32> to vector<16x32xf32>
    %414 = vector.extract_strided_slice %411 {offsets = [0, 0], sizes = [16, 1], strides = [1, 1]} : vector<16x2xf32> to vector<16x1xf32>
    %415 = vector.broadcast %414 : vector<16x1xf32> to vector<16x32xf32>
    %416 = arith.mulf %415, %413 : vector<16x32xf32>
    %417 = arith.addf %405, %416 : vector<16x32xf32>
    %418 = vector.extract_strided_slice %411 {offsets = [0, 1], sizes = [16, 1], strides = [1, 1]} : vector<16x2xf32> to vector<16x1xf32>
    %419 = vector.broadcast %418 : vector<16x1xf32> to vector<16x32xf32>
    %420 = arith.mulf %419, %413 : vector<16x32xf32>
    %421 = arith.addf %409, %420 : vector<16x32xf32>
    %422 = arith.subf %356, %381 : vector<16x2xf32>
    %423 = math.exp %422 : vector<16x2xf32>
    %424 = arith.addf %412, %423 : vector<16x2xf32>
    %425 = vector.extract_strided_slice %382 {offsets = [48, 0], sizes = [16, 32], strides = [1, 1]} : vector<128x32xf32> to vector<16x32xf32>
    %426 = vector.extract_strided_slice %423 {offsets = [0, 0], sizes = [16, 1], strides = [1, 1]} : vector<16x2xf32> to vector<16x1xf32>
    %427 = vector.broadcast %426 : vector<16x1xf32> to vector<16x32xf32>
    %428 = arith.mulf %427, %425 : vector<16x32xf32>
    %429 = arith.addf %417, %428 : vector<16x32xf32>
    %430 = vector.extract_strided_slice %423 {offsets = [0, 1], sizes = [16, 1], strides = [1, 1]} : vector<16x2xf32> to vector<16x1xf32>
    %431 = vector.broadcast %430 : vector<16x1xf32> to vector<16x32xf32>
    %432 = arith.mulf %431, %425 : vector<16x32xf32>
    %433 = arith.addf %421, %432 : vector<16x32xf32>
    %434 = arith.subf %362, %381 : vector<16x2xf32>
    %435 = math.exp %434 : vector<16x2xf32>
    %436 = arith.addf %424, %435 : vector<16x2xf32>
    %437 = vector.extract_strided_slice %382 {offsets = [64, 0], sizes = [16, 32], strides = [1, 1]} : vector<128x32xf32> to vector<16x32xf32>
    %438 = vector.extract_strided_slice %435 {offsets = [0, 0], sizes = [16, 1], strides = [1, 1]} : vector<16x2xf32> to vector<16x1xf32>
    %439 = vector.broadcast %438 : vector<16x1xf32> to vector<16x32xf32>
    %440 = arith.mulf %439, %437 : vector<16x32xf32>
    %441 = arith.addf %429, %440 : vector<16x32xf32>
    %442 = vector.extract_strided_slice %435 {offsets = [0, 1], sizes = [16, 1], strides = [1, 1]} : vector<16x2xf32> to vector<16x1xf32>
    %443 = vector.broadcast %442 : vector<16x1xf32> to vector<16x32xf32>
    %444 = arith.mulf %443, %437 : vector<16x32xf32>
    %445 = arith.addf %433, %444 : vector<16x32xf32>
    %446 = arith.subf %368, %381 : vector<16x2xf32>
    %447 = math.exp %446 : vector<16x2xf32>
    %448 = arith.addf %436, %447 : vector<16x2xf32>
    %449 = vector.extract_strided_slice %382 {offsets = [80, 0], sizes = [16, 32], strides = [1, 1]} : vector<128x32xf32> to vector<16x32xf32>
    %450 = vector.extract_strided_slice %447 {offsets = [0, 0], sizes = [16, 1], strides = [1, 1]} : vector<16x2xf32> to vector<16x1xf32>
    %451 = vector.broadcast %450 : vector<16x1xf32> to vector<16x32xf32>
    %452 = arith.mulf %451, %449 : vector<16x32xf32>
    %453 = arith.addf %441, %452 : vector<16x32xf32>
    %454 = vector.extract_strided_slice %447 {offsets = [0, 1], sizes = [16, 1], strides = [1, 1]} : vector<16x2xf32> to vector<16x1xf32>
    %455 = vector.broadcast %454 : vector<16x1xf32> to vector<16x32xf32>
    %456 = arith.mulf %455, %449 : vector<16x32xf32>
    %457 = arith.addf %445, %456 : vector<16x32xf32>
    %458 = arith.subf %374, %381 : vector<16x2xf32>
    %459 = math.exp %458 : vector<16x2xf32>
    %460 = arith.addf %448, %459 : vector<16x2xf32>
    %461 = vector.extract_strided_slice %382 {offsets = [96, 0], sizes = [16, 32], strides = [1, 1]} : vector<128x32xf32> to vector<16x32xf32>
    %462 = vector.extract_strided_slice %459 {offsets = [0, 0], sizes = [16, 1], strides = [1, 1]} : vector<16x2xf32> to vector<16x1xf32>
    %463 = vector.broadcast %462 : vector<16x1xf32> to vector<16x32xf32>
    %464 = arith.mulf %463, %461 : vector<16x32xf32>
    %465 = arith.addf %453, %464 : vector<16x32xf32>
    %466 = vector.extract_strided_slice %459 {offsets = [0, 1], sizes = [16, 1], strides = [1, 1]} : vector<16x2xf32> to vector<16x1xf32>
    %467 = vector.broadcast %466 : vector<16x1xf32> to vector<16x32xf32>
    %468 = arith.mulf %467, %461 : vector<16x32xf32>
    %469 = arith.addf %457, %468 : vector<16x32xf32>
    %470 = arith.subf %380, %381 : vector<16x2xf32>
    %471 = math.exp %470 : vector<16x2xf32>
    %472 = arith.addf %460, %471 : vector<16x2xf32>
    %473 = vector.extract_strided_slice %382 {offsets = [112, 0], sizes = [16, 32], strides = [1, 1]} : vector<128x32xf32> to vector<16x32xf32>
    %474 = vector.extract_strided_slice %471 {offsets = [0, 0], sizes = [16, 1], strides = [1, 1]} : vector<16x2xf32> to vector<16x1xf32>
    %475 = vector.broadcast %474 : vector<16x1xf32> to vector<16x32xf32>
    %476 = arith.mulf %475, %473 : vector<16x32xf32>
    %477 = arith.addf %465, %476 : vector<16x32xf32>
    %478 = vector.extract_strided_slice %471 {offsets = [0, 1], sizes = [16, 1], strides = [1, 1]} : vector<16x2xf32> to vector<16x1xf32>
    %479 = vector.broadcast %478 : vector<16x1xf32> to vector<16x32xf32>
    %480 = arith.mulf %479, %473 : vector<16x32xf32>
    %481 = arith.addf %469, %480 : vector<16x32xf32>
    %482 = tpu.reciprocal %472 {approx = true} : vector<16x2xf32> -> vector<16x2xf32>
    %483 = vector.extract_strided_slice %482 {offsets = [0, 0], sizes = [16, 1], strides = [1, 1]} : vector<16x2xf32> to vector<16x1xf32>
    %484 = vector.broadcast %483 : vector<16x1xf32> to vector<16x32xf32>
    %485 = arith.mulf %477, %484 : vector<16x32xf32>
    %486 = vector.extract_strided_slice %482 {offsets = [0, 1], sizes = [16, 1], strides = [1, 1]} : vector<16x2xf32> to vector<16x1xf32>
    %487 = vector.broadcast %486 : vector<16x1xf32> to vector<16x32xf32>
    %488 = arith.mulf %481, %487 : vector<16x32xf32>
    %489 = tpu.concatenate %485, %488 in 1 : vector<16x32xf32>, vector<16x32xf32> -> vector<16x64xf32>
    %490 = arith.truncf %489 : vector<16x64xf32> to vector<16x64xbf16>
    %c0_64 = arith.constant 0 : index
    %c0_65 = arith.constant 0 : index
    %491 = vector.load %arg8[%c0_64, %c0_65] : memref<64x64xbf16, #tpu.memory_space<vmem>>, vector<64x64xbf16>
    %cst_66 = arith.constant dense<0.000000e+00> : vector<16x64xf32>
    %492 = tpu.matmul %490, %491, %cst_66 {dimension_numbers = #tpu.dot_dimension_numbers<[1], [0], [0], [1], [0, 0, 1, 1], [], []>} : vector<16x64xbf16>, vector<64x64xbf16>, vector<16x64xf32> -> vector<16x64xf32>
    %493 = vector.broadcast %5 : vector<1x64xf32> to vector<16x64xf32>
    %494 = arith.addf %492, %493 : vector<16x64xf32>
    %495 = vector.extract_strided_slice %494 {offsets = [0, 0], sizes = [16, 32], strides = [1, 1]} : vector<16x64xf32> to vector<16x32xf32>
    %496 = arith.negf %495 : vector<16x32xf32>
    %497 = math.exp %496 : vector<16x32xf32>
    %cst_67 = arith.constant 1.000000e+00 : f32
    %498 = vector.broadcast %cst_67 : f32 to vector<16x32xf32>
    %499 = arith.addf %498, %497 : vector<16x32xf32>
    %500 = arith.divf %498, %499 : vector<16x32xf32>
    %501 = vector.extract_strided_slice %494 {offsets = [0, 32], sizes = [16, 32], strides = [1, 1]} : vector<16x64xf32> to vector<16x32xf32>
    %502 = arith.addf %331, %500 : vector<16x32xf32>
    %cst_68 = arith.constant dense<0.000000e+00> : vector<16xf32>
    %503 = vector.multi_reduction <add>, %502, %cst_68 [1] : vector<16x32xf32> to vector<16xf32>
    %504 = vector.shape_cast %503 : vector<16xf32> to vector<16x1xf32>
    %cst_69 = arith.constant 3.200000e+01 : f32
    %505 = vector.broadcast %cst_69 : f32 to vector<16x1xf32>
    %506 = arith.divf %504, %505 : vector<16x1xf32>
    %507 = vector.broadcast %506 : vector<16x1xf32> to vector<16x32xf32>
    %508 = arith.subf %502, %507 : vector<16x32xf32>
    %509 = arith.mulf %508, %508 : vector<16x32xf32>
    %cst_70 = arith.constant dense<0.000000e+00> : vector<16xf32>
    %510 = vector.multi_reduction <add>, %509, %cst_70 [1] : vector<16x32xf32> to vector<16xf32>
    %511 = vector.shape_cast %510 : vector<16xf32> to vector<16x1xf32>
    %cst_71 = arith.constant 3.200000e+01 : f32
    %512 = vector.broadcast %cst_71 : f32 to vector<16x1xf32>
    %513 = arith.divf %511, %512 : vector<16x1xf32>
    %514 = vector.broadcast %506 : vector<16x1xf32> to vector<16x32xf32>
    %515 = arith.subf %502, %514 : vector<16x32xf32>
    %cst_72 = arith.constant 9.99999974E-6 : f32
    %516 = vector.broadcast %cst_72 : f32 to vector<16x1xf32>
    %517 = arith.addf %513, %516 : vector<16x1xf32>
    %518 = math.rsqrt %517 : vector<16x1xf32>
    %519 = vector.broadcast %518 : vector<16x1xf32> to vector<16x32xf32>
    %520 = arith.mulf %515, %519 : vector<16x32xf32>
    %521 = vector.broadcast %6 : vector<1x32xf32> to vector<16x32xf32>
    %522 = arith.mulf %520, %521 : vector<16x32xf32>
    %523 = vector.broadcast %7 : vector<1x32xf32> to vector<16x32xf32>
    %524 = arith.addf %522, %523 : vector<16x32xf32>
    %525 = arith.addf %501, %334 : vector<16x32xf32>
    %cst_73 = arith.constant 0.000000e+00 : f32
    %526 = vector.broadcast %cst_73 : f32 to vector<16x32xf32>
    %527 = tpu.concatenate %524, %525, %331, %526 in 1 : vector<16x32xf32>, vector<16x32xf32>, vector<16x32xf32>, vector<16x32xf32> -> vector<16x128xf32>
    %c0_74 = arith.constant 0 : index
    %c0_75 = arith.constant 0 : index
    %528 = vector.load %arg10[%c0_74, %c0_75] : memref<16x128xf32, #tpu.memory_space<vmem>>, vector<16x128xf32>
    tpu.vector_store %arg10[%c0_74, %c0_75], %527 {strides = array<i32>} : memref<16x128xf32, #tpu.memory_space<vmem>>, vector<16x128xf32>,
    return
  }
  func.func @transform_0(%arg0: i32) -> (i32, i32) {
    %c0_i32 = arith.constant 0 : i32
    %c0_i32_0 = arith.constant 0 : i32
    return %arg0, %c0_i32 : i32, i32
  }
  func.func @transform_1(%arg0: i32) -> (i32, i32) {
    %c0_i32 = arith.constant 0 : i32
    %c0_i32_0 = arith.constant 0 : i32
    return %arg0, %c0_i32 : i32, i32
  }
  func.func @transform_2(%arg0: i32) -> (i32, i32) {
    %c0_i32 = arith.constant 0 : i32
    %c0_i32_0 = arith.constant 0 : i32
    return %arg0, %c0_i32 : i32, i32
  }
  func.func @transform_3(%arg0: i32) -> (i32, i32) {
    %c0_i32 = arith.constant 0 : i32
    %c0_i32_0 = arith.constant 0 : i32
    %c0_i32_1 = arith.constant 0 : i32
    return %c0_i32, %c0_i32_0 : i32, i32
  }
  func.func @transform_4(%arg0: i32) -> (i32, i32) {
    %c0_i32 = arith.constant 0 : i32
    %c0_i32_0 = arith.constant 0 : i32
    %c0_i32_1 = arith.constant 0 : i32
    return %c0_i32, %c0_i32_0 : i32, i32
  }
  func.func @transform_5(%arg0: i32) -> (i32, i32) {
    %c0_i32 = arith.constant 0 : i32
    %c0_i32_0 = arith.constant 0 : i32
    %c0_i32_1 = arith.constant 0 : i32
    return %c0_i32, %c0_i32_0 : i32, i32
  }
  func.func @transform_6(%arg0: i32) -> (i32, i32) {
    %c0_i32 = arith.constant 0 : i32
    %c0_i32_0 = arith.constant 0 : i32
    %c0_i32_1 = arith.constant 0 : i32
    return %c0_i32, %c0_i32_0 : i32, i32
  }
  func.func @transform_7(%arg0: i32) -> (i32, i32) {
    %c0_i32 = arith.constant 0 : i32
    %c0_i32_0 = arith.constant 0 : i32
    %c0_i32_1 = arith.constant 0 : i32
    return %c0_i32, %c0_i32_0 : i32, i32
  }
  func.func @transform_8(%arg0: i32) -> (i32, i32) {
    %c0_i32 = arith.constant 0 : i32
    %c0_i32_0 = arith.constant 0 : i32
    %c0_i32_1 = arith.constant 0 : i32
    return %c0_i32, %c0_i32_0 : i32, i32
  }
  func.func @transform_9(%arg0: i32) -> (i32, i32) {
    %c0_i32 = arith.constant 0 : i32
    %c0_i32_0 = arith.constant 0 : i32
    return %arg0, %c0_i32 : i32, i32
  }
}

</mosaic_0001>

<llo_original>
// kernel: tpu_custom_call.1
$region0: #{tpu_custom_call.1}
  #allocation0 [shape = 'u32[]', space=smem, size = 0x4, offset = 0x4, fixed_abs, tag = 'smem constant byte address 0x4 - core index']
  #allocation1 [shape = 'u32[144,128]{1,0:T(1,128)}', space=vmem, size = 0x12000, scoped, tag = 'internal scratch']
  %s0 = inlined_call_operand.vmem [shape: bf16[128,32], index: 0, kind: input, shape index: {}]
  %s1 = inlined_call_operand.vmem [shape: s32[16,1], index: 1, kind: input, shape index: {}]
  %s2 = inlined_call_operand.vmem [shape: bf16[16,32], index: 2, kind: input, shape index: {}]
  %s3 = inlined_call_operand.vmem [shape: bf16[32,128], index: 3, kind: input, shape index: {}]
  %s4 = inlined_call_operand.vmem [shape: bf16[32,96], index: 4, kind: input, shape index: {}]
  %s5 = inlined_call_operand.vmem [shape: bf16[32,96], index: 5, kind: input, shape index: {}]
  %s6 = inlined_call_operand.vmem [shape: bf16[32,2], index: 6, kind: input, shape index: {}]
  %s7 = inlined_call_operand.vmem [shape: bf16[64,64], index: 7, kind: input, shape index: {}]
  %s8 = inlined_call_operand.vmem [shape: f32[8,128], index: 8, kind: input, shape index: {}]
  %s9 = inlined_call_operand.hbm [shape: f32[16,128], index: 9, kind: output, shape index: {}]
  %s10 = sld [smem:[#allocation0]]
  $region46: #{tpu_custom_call.1} parent=0
    _
  %s12 = ssub.s32 1, %s10
  %s13 = scalar_select 0, %s12, %s10
  $region1: #{tpu_custom_call.1} parent=0
    #allocation2 [shape = 'u8[8192]{0}', space=vmem, size = 0x2000, scoped, tag = 'output window, operand 0, single buffered']
    #allocation3 [shape = 's32[1]{0}', space=sflag, size = 0x4, scoped, tag = 'scoped memory for tpu_custom_call.1']
    %14 = vsyncpa [#allocation3], 0
    // Predicated region
    $region2: #{tpu_custom_call.1} parent=1 // pred_check
      _
    $region3: #{tpu_custom_call.1} parent=1 // pred_check_branch
      %16 = sbr.rel (0) target = $region5
    $region4: #{tpu_custom_call.1} parent=1 // pred_region
      _
    $region5: #{tpu_custom_call.1} parent=1 // pred_fallthru
      _
    // Predicated region
    $region6: #{tpu_custom_call.1} parent=1 // pred_check
      _
    $region7: #{tpu_custom_call.1} parent=1 // pred_check_branch
      %18 = sbr.rel (0) target = $region9
    $region8: #{tpu_custom_call.1} parent=1 // pred_region
      _
    $region9: #{tpu_custom_call.1} parent=1 // pred_fallthru
      _
    // Predicated region
    $region10: #{tpu_custom_call.1} parent=1 // pred_check
      _
    $region11: #{tpu_custom_call.1} parent=1 // pred_check_branch
      %20 = sbr.rel (0) target = $region13
    $region12: #{tpu_custom_call.1} parent=1 // pred_region
      _
    $region13: #{tpu_custom_call.1} parent=1 // pred_fallthru
      _
    // Predicated region
    $region14: #{tpu_custom_call.1} parent=1 // pred_check
      _
    $region15: #{tpu_custom_call.1} parent=1 // pred_check_branch
      %22 = sbr.rel (0) target = $region17
    $region16: #{tpu_custom_call.1} parent=1 // pred_region
      _
    $region17: #{tpu_custom_call.1} parent=1 // pred_fallthru
      _
    // Predicated region
    $region18: #{tpu_custom_call.1} parent=1 // pred_check
      _
    $region19: #{tpu_custom_call.1} parent=1 // pred_check_branch
      %24 = sbr.rel (0) target = $region21
    $region20: #{tpu_custom_call.1} parent=1 // pred_region
      _
    $region21: #{tpu_custom_call.1} parent=1 // pred_fallthru
      _
    // Predicated region
    $region22: #{tpu_custom_call.1} parent=1 // pred_check
      _
    $region23: #{tpu_custom_call.1} parent=1 // pred_check_branch
      %26 = sbr.rel (0) target = $region25
    $region24: #{tpu_custom_call.1} parent=1 // pred_region
      _
    $region25: #{tpu_custom_call.1} parent=1 // pred_fallthru
      _
    // Predicated region
    $region26: #{tpu_custom_call.1} parent=1 // pred_check
      _
    $region27: #{tpu_custom_call.1} parent=1 // pred_check_branch
      %28 = sbr.rel (0) target = $region29
    $region28: #{tpu_custom_call.1} parent=1 // pred_region
      _
    $region29: #{tpu_custom_call.1} parent=1 // pred_fallthru
      _
    // Predicated region
    $region30: #{tpu_custom_call.1} parent=1 // pred_check
      _
    $region31: #{tpu_custom_call.1} parent=1 // pred_check_branch
      %30 = sbr.rel (0) target = $region33
    $region32: #{tpu_custom_call.1} parent=1 // pred_region
      _
    $region33: #{tpu_custom_call.1} parent=1 // pred_fallthru
      _
    // Predicated region
    $region34: #{tpu_custom_call.1} parent=1 // pred_check
      _
    $region35: #{tpu_custom_call.1} parent=1 // pred_check_branch
      %32 = sbr.rel (0) target = $region37
    $region36: #{tpu_custom_call.1} parent=1 // pred_region
      _
    $region37: #{tpu_custom_call.1} parent=1 // pred_fallthru
      _
    %v34 = vld [vmem:[%s8] sm:$0xff]
    %v35 = vld [vmem:[%s0] sm:$0xf]
    %v36 = vld [vmem:[%s0 + $0x4] sm:$0xf]
    %v37 = vld [vmem:[%s0 + $0x8] sm:$0xf]
    %v38 = vld [vmem:[%s0 + $0xc] sm:$0xf]
    %v39 = vld [vmem:[%s0 + $0x10] sm:$0xf]
    %v40 = vld [vmem:[%s0 + $0x14] sm:$0xf]
    %v41 = vld [vmem:[%s0 + $0x18] sm:$0xf]
    %v42 = vld [vmem:[%s0 + $0x1c] sm:$0xf]
    %v43 = vld [vmem:[%s0 + $0x20] sm:$0xf]
    %v44 = vld [vmem:[%s0 + $0x24] sm:$0xf]
    %v45 = vld [vmem:[%s0 + $0x28] sm:$0xf]
    %v46 = vld [vmem:[%s0 + $0x2c] sm:$0xf]
    %v47 = vld [vmem:[%s0 + $0x30] sm:$0xf]
    %v48 = vld [vmem:[%s0 + $0x34] sm:$0xf]
    %v49 = vld [vmem:[%s0 + $0x38] sm:$0xf]
    %v50 = vld [vmem:[%s0 + $0x3c] sm:$0xf]
    %v51 = vld [vmem:[%s1] sm:$0xff]
    %v52 = vld [vmem:[%s1 + $0x8] sm:$0xff]
    %v53 = vld [vmem:[%s3] sm:$0xf]
    %v54 = vld [vmem:[%s3 + $0x4] sm:$0xf]
    %v55 = vld [vmem:[%s3 + $0x8] sm:$0xf]
    %v56 = vld [vmem:[%s3 + $0xc] sm:$0xf]
    %v57 = vlaneseq
    %v58 = vshrl.u32 %v57, 7
    %v59 = vsub.s32 0, %v58
    %v60 = vrot.slane %v34, %v59
    %v77 = vunpack.c.l.b16 %v35
    %v78 = vunpack.c.l.b16 %v36
    %v79 = vunpack.c.l.b16 %v37
    %v80 = vunpack.c.l.b16 %v38
    %v81 = vunpack.c.l.b16 %v39
    %v82 = vunpack.c.l.b16 %v40
    %v83 = vunpack.c.l.b16 %v41
    %v84 = vunpack.c.l.b16 %v42
    %v85 = vunpack.c.l.b16 %v43
    %v86 = vunpack.c.l.b16 %v44
    %v87 = vunpack.c.l.b16 %v45
    %v88 = vunpack.c.l.b16 %v46
    %v89 = vunpack.c.l.b16 %v47
    %v90 = vunpack.c.l.b16 %v48
    %v91 = vunpack.c.l.b16 %v49
    %v92 = vunpack.c.l.b16 %v50
    %v93 = vpack.c.b16 %v78, %v77
    %v94 = vpack.c.b16 %v80, %v79
    %v95 = vpack.c.b16 %v82, %v81
    %v96 = vpack.c.b16 %v84, %v83
    %v97 = vpack.c.b16 %v86, %v85
    %v98 = vpack.c.b16 %v88, %v87
    %v99 = vpack.c.b16 %v90, %v89
    %v100 = vpack.c.b16 %v92, %v91
    %v105 = vunpack.c.l.b16 %v53
    %v106 = vunpack.c.l.b16 %v54
    %v107 = vunpack.c.l.b16 %v55
    %v108 = vunpack.c.l.b16 %v56
    %v109 = vpack.c.b16 %v106, %v105
    %v110 = vpack.c.b16 %v108, %v107
    %vm113 = vcmask 261120
    %v115 = vsel %vm113, %v93, 0
    %v118 = vsel %vm113, %v94, 0
    %v121 = vsel %vm113, %v95, 0
    %v124 = vsel %vm113, %v96, 0
    %v127 = vsel %vm113, %v97, 0
    %v130 = vsel %vm113, %v98, 0
    %v133 = vsel %vm113, %v99, 0
    %v136 = vsel %vm113, %v100, 0
    %138 = vmatprep.subr.bf16.mxu0 0
    %139 = vmatpush1.bf16.msra.mxu0 %v109
    %140 = vmatprep.subr.bf16.mxu0 0
    %141 = vmatpush1.bf16.msra.mxu0 %v110
    %142 = vmatprep.subr.bf16.mxu0 0
    %143 = vmatpush1.bf16.msra.mxu0 0
    %144 = vmatprep.subr.bf16.mxu0 0
    %145 = vmatpush1.bf16.msra.mxu0 0
    %146 = vmatprep.subr.bf16.mxu0 0
    %147 = vmatpush1.bf16.msra.mxu0 0
    %148 = vmatprep.subr.bf16.mxu0 0
    %149 = vmatpush1.bf16.msra.mxu0 0
    %150 = vmatprep.subr.bf16.mxu0 0
    %151 = vmatpush1.bf16.msra.mxu0 0
    %152 = vmatprep.subr.bf16.mxu0 0
    %153 = vmatpush1.bf16.msra.mxu0 0
    %154 = vmatprep.subr.bf16.mxu0 0
    %155 = vmatpush1.bf16.msra.mxu0 0
    %156 = vmatprep.subr.bf16.mxu0 0
    %157 = vmatpush1.bf16.msra.mxu0 0
    %158 = vmatprep.subr.bf16.mxu0 0
    %159 = vmatpush1.bf16.msra.mxu0 0
    %160 = vmatprep.subr.bf16.mxu0 0
    %161 = vmatpush1.bf16.msra.mxu0 0
    %162 = vmatprep.subr.bf16.mxu0 0
    %163 = vmatpush1.bf16.msra.mxu0 0
    %164 = vmatprep.subr.bf16.mxu0 0
    %165 = vmatpush1.bf16.msra.mxu0 0
    %166 = vmatprep.subr.bf16.mxu0 0
    %167 = vmatpush1.bf16.msra.mxu0 0
    %168 = vmatprep.subr.bf16.mxu0 0
    %169 = vmatpush1.bf16.msra.mxu0 0
    %170 = vmatprep.mubr.bf16.mxu0 0
    %171 = vmatmul.mubr.bf16.gmra.mrb[0].mxu0 %v115
    %v172 = vpop.f32.mrb[0].mxu0
    %v173 = vadd.f32 %v60, %v172
    %v174 = vpop.f32.mrb[0].mxu0
    %v175 = vpop.f32.mrb[0].mxu0
    %v176 = vadd.f32 %v60, %v175
    %v177 = vpop.f32.mrb[0].mxu0
    %178 = vmatprep.mubr.bf16.mxu0 0
    %179 = vmatmul.mubr.bf16.gmra.mrb[0].mxu0 %v118
    %v180 = vpop.f32.mrb[0].mxu0
    %v181 = vadd.f32 %v60, %v180
    %v182 = vpop.f32.mrb[0].mxu0
    %v183 = vpop.f32.mrb[0].mxu0
    %v184 = vadd.f32 %v60, %v183
    %v185 = vpop.f32.mrb[0].mxu0
    %186 = vmatprep.mubr.bf16.mxu0 0
    %187 = vmatmul.mubr.bf16.gmra.mrb[0].mxu0 %v121
    %v188 = vpop.f32.mrb[0].mxu0
    %v189 = vadd.f32 %v60, %v188
    %v190 = vpop.f32.mrb[0].mxu0
    %v191 = vpop.f32.mrb[0].mxu0
    %v192 = vadd.f32 %v60, %v191
    %v193 = vpop.f32.mrb[0].mxu0
    %194 = vmatprep.mubr.bf16.mxu0 0
    %195 = vmatmul.mubr.bf16.gmra.mrb[0].mxu0 %v124
    %v196 = vpop.f32.mrb[0].mxu0
    %v197 = vadd.f32 %v60, %v196
    %v198 = vpop.f32.mrb[0].mxu0
    %v199 = vpop.f32.mrb[0].mxu0
    %v200 = vadd.f32 %v60, %v199
    %v201 = vpop.f32.mrb[0].mxu0
    %202 = vmatprep.mubr.bf16.mxu0 0
    %203 = vmatmul.mubr.bf16.gmra.mrb[0].mxu0 %v127
    %v204 = vpop.f32.mrb[0].mxu0
    %v205 = vadd.f32 %v60, %v204
    %v206 = vpop.f32.mrb[0].mxu0
    %v207 = vpop.f32.mrb[0].mxu0
    %v208 = vadd.f32 %v60, %v207
    %v209 = vpop.f32.mrb[0].mxu0
    %210 = vmatprep.mubr.bf16.mxu0 0
    %211 = vmatmul.mubr.bf16.gmra.mrb[0].mxu0 %v130
    %v212 = vpop.f32.mrb[0].mxu0
    %v213 = vadd.f32 %v60, %v212
    %v214 = vpop.f32.mrb[0].mxu0
    %v215 = vpop.f32.mrb[0].mxu0
    %v216 = vadd.f32 %v60, %v215
    %v217 = vpop.f32.mrb[0].mxu0
    %218 = vmatprep.mubr.bf16.mxu0 0
    %219 = vmatmul.mubr.bf16.gmra.mrb[0].mxu0 %v133
    %v220 = vpop.f32.mrb[0].mxu0
    %v221 = vadd.f32 %v60, %v220
    %v222 = vpop.f32.mrb[0].mxu0
    %v223 = vpop.f32.mrb[0].mxu0
    %v224 = vadd.f32 %v60, %v223
    %v225 = vpop.f32.mrb[0].mxu0
    %226 = vmatprep.mubr.bf16.mxu0 0
    %227 = vmatmul.mubr.bf16.gmra.mrb[0].mxu0 %v136
    %v228 = vpop.f32.mrb[0].mxu0
    %v229 = vadd.f32 %v60, %v228
    %v230 = vpop.f32.mrb[0].mxu0
    %v231 = vpop.f32.mrb[0].mxu0
    %v232 = vadd.f32 %v60, %v231
    %v233 = vpop.f32.mrb[0].mxu0
    %234 = vdwg.mxu0
    %v235 = vtanh.pop %v173
    %v236 = vtanh.pop %v176
    %v237 = vtanh.pop %v181
    %v238 = vtanh.pop %v184
    %v239 = vtanh.pop %v189
    %v240 = vtanh.pop %v192
    %v241 = vtanh.pop %v197
    %v242 = vtanh.pop %v200
    %v243 = vtanh.pop %v205
    %v244 = vtanh.pop %v208
    %v245 = vtanh.pop %v213
    %v246 = vtanh.pop %v216
    %v247 = vtanh.pop %v221
    %v248 = vtanh.pop %v224
    %v249 = vtanh.pop %v229
    %v250 = vtanh.pop %v232
    %v251 = vpack.c.bf16 %v236, %v235
    %v252 = vpack.c.bf16 %v238, %v237
    %v253 = vpack.c.bf16 %v240, %v239
    %v254 = vpack.c.bf16 %v242, %v241
    %v255 = vpack.c.bf16 %v244, %v243
    %v256 = vpack.c.bf16 %v246, %v245
    %v257 = vpack.c.bf16 %v248, %v247
    %v258 = vpack.c.bf16 %v250, %v249
    %v259 = vld [vmem:[%s6] sm:$0xf]
    %v260 = vld [vmem:[%s6 + $0x4] sm:$0xf]
    %v261 = vld [vmem:[%s6 + $0x8] sm:$0xf]
    %v262 = vld [vmem:[%s6 + $0xc] sm:$0xf]
    %271 = vrot.lane.b32.xlu0 %v251, 32
    %v272 = vpop.permute.xlu0 %271
    %273 = vrot.lane.b32.xlu0 %v252, 32
    %v274 = vpop.permute.xlu0 %273
    %275 = vrot.lane.b32.xlu0 %v253, 32
    %v276 = vpop.permute.xlu0 %275
    %277 = vrot.lane.b32.xlu0 %v254, 32
    %v278 = vpop.permute.xlu0 %277
    %279 = vrot.lane.b32.xlu0 %v255, 32
    %v280 = vpop.permute.xlu0 %279
    %281 = vrot.lane.b32.xlu0 %v256, 32
    %v282 = vpop.permute.xlu0 %281
    %283 = vrot.lane.b32.xlu0 %v257, 32
    %v284 = vpop.permute.xlu0 %283
    %285 = vrot.lane.b32.xlu0 %v258, 32
    %v286 = vpop.permute.xlu0 %285
    %v291 = vunpack.c.l.b16 %v259
    %v292 = vunpack.c.l.b16 %v260
    %v293 = vunpack.c.l.b16 %v261
    %v294 = vunpack.c.l.b16 %v262
    %v295 = vpack.c.b16 %v292, %v291
    %v296 = vpack.c.b16 %v294, %v293
    %v300 = vsel %vm113, %v272, 0
    %v303 = vsel %vm113, %v274, 0
    %v306 = vsel %vm113, %v276, 0
    %v309 = vsel %vm113, %v278, 0
    %v312 = vsel %vm113, %v280, 0
    %v315 = vsel %vm113, %v282, 0
    %v318 = vsel %vm113, %v284, 0
    %v321 = vsel %vm113, %v286, 0
    %323 = vmatprep.subr.bf16.mxu0 0
    %324 = vmatpush1.bf16.msra.mxu0 %v295
    %325 = vmatprep.subr.bf16.mxu0 0
    %326 = vmatpush1.bf16.msra.mxu0 %v296
    %327 = vmatprep.subr.bf16.mxu0 0
    %328 = vmatpush1.bf16.msra.mxu0 0
    %329 = vmatprep.subr.bf16.mxu0 0
    %330 = vmatpush1.bf16.msra.mxu0 0
    %331 = vmatprep.subr.bf16.mxu0 0
    %332 = vmatpush1.bf16.msra.mxu0 0
    %333 = vmatprep.subr.bf16.mxu0 0
    %334 = vmatpush1.bf16.msra.mxu0 0
    %335 = vmatprep.subr.bf16.mxu0 0
    %336 = vmatpush1.bf16.msra.mxu0 0
    %337 = vmatprep.subr.bf16.mxu0 0
    %338 = vmatpush1.bf16.msra.mxu0 0
    %339 = vmatprep.subr.bf16.mxu0 0
    %340 = vmatpush1.bf16.msra.mxu0 0
    %341 = vmatprep.subr.bf16.mxu0 0
    %342 = vmatpush1.bf16.msra.mxu0 0
    %343 = vmatprep.subr.bf16.mxu0 0
    %344 = vmatpush1.bf16.msra.mxu0 0
    %345 = vmatprep.subr.bf16.mxu0 0
    %346 = vmatpush1.bf16.msra.mxu0 0
    %347 = vmatprep.subr.bf16.mxu0 0
    %348 = vmatpush1.bf16.msra.mxu0 0
    %349 = vmatprep.subr.bf16.mxu0 0
    %350 = vmatpush1.bf16.msra.mxu0 0
    %351 = vmatprep.subr.bf16.mxu0 0
    %352 = vmatpush1.bf16.msra.mxu0 0
    %353 = vmatprep.subr.bf16.mxu0 0
    %354 = vmatpush1.bf16.msra.mxu0 0
    %355 = vmatprep.mubr.bf16.mxu0 0
    %356 = vmatmul.mubr.bf16.gmra.mrb[0].mxu0 %v300
    %v357 = vpop.f32.mrb[0].mxu0
    %v358 = vadd.f32 0.0, %v357
    %v359 = vpop.f32.mrb[0].mxu0
    %v360 = vpop.f32.mrb[0].mxu0
    %v361 = vadd.f32 0.0, %v360
    %v362 = vpop.f32.mrb[0].mxu0
    %363 = vmatprep.mubr.bf16.mxu0 0
    %364 = vmatmul.mubr.bf16.gmra.mrb[0].mxu0 %v303
    %v365 = vpop.f32.mrb[0].mxu0
    %v366 = vadd.f32 0.0, %v365
    %v367 = vpop.f32.mrb[0].mxu0
    %v368 = vpop.f32.mrb[0].mxu0
    %v369 = vadd.f32 0.0, %v368
    %v370 = vpop.f32.mrb[0].mxu0
    %371 = vmatprep.mubr.bf16.mxu0 0
    %372 = vmatmul.mubr.bf16.gmra.mrb[0].mxu0 %v306
    %v373 = vpop.f32.mrb[0].mxu0
    %v374 = vadd.f32 0.0, %v373
    %v375 = vpop.f32.mrb[0].mxu0
    %v376 = vpop.f32.mrb[0].mxu0
    %v377 = vadd.f32 0.0, %v376
    %v378 = vpop.f32.mrb[0].mxu0
    %379 = vmatprep.mubr.bf16.mxu0 0
    %380 = vmatmul.mubr.bf16.gmra.mrb[0].mxu0 %v309
    %v381 = vpop.f32.mrb[0].mxu0
    %v382 = vadd.f32 0.0, %v381
    %v383 = vpop.f32.mrb[0].mxu0
    %v384 = vpop.f32.mrb[0].mxu0
    %v385 = vadd.f32 0.0, %v384
    %v386 = vpop.f32.mrb[0].mxu0
    %387 = vmatprep.mubr.bf16.mxu0 0
    %388 = vmatmul.mubr.bf16.gmra.mrb[0].mxu0 %v312
    %v389 = vpop.f32.mrb[0].mxu0
    %v390 = vadd.f32 0.0, %v389
    %v391 = vpop.f32.mrb[0].mxu0
    %v392 = vpop.f32.mrb[0].mxu0
    %v393 = vadd.f32 0.0, %v392
    %v394 = vpop.f32.mrb[0].mxu0
    %395 = vmatprep.mubr.bf16.mxu0 0
    %396 = vmatmul.mubr.bf16.gmra.mrb[0].mxu0 %v315
    %v397 = vpop.f32.mrb[0].mxu0
    %v398 = vadd.f32 0.0, %v397
    %v399 = vpop.f32.mrb[0].mxu0
    %v400 = vpop.f32.mrb[0].mxu0
    %v401 = vadd.f32 0.0, %v400
    %v402 = vpop.f32.mrb[0].mxu0
    %403 = vmatprep.mubr.bf16.mxu0 0
    %404 = vmatmul.mubr.bf16.gmra.mrb[0].mxu0 %v318
    %v405 = vpop.f32.mrb[0].mxu0
    %v406 = vadd.f32 0.0, %v405
    %v407 = vpop.f32.mrb[0].mxu0
    %v408 = vpop.f32.mrb[0].mxu0
    %v409 = vadd.f32 0.0, %v408
    %v410 = vpop.f32.mrb[0].mxu0
    %411 = vmatprep.mubr.bf16.mxu0 0
    %412 = vmatmul.mubr.bf16.gmra.mrb[0].mxu0 %v321
    %v413 = vpop.f32.mrb[0].mxu0
    %v414 = vadd.f32 0.0, %v413
    %v415 = vpop.f32.mrb[0].mxu0
    %v416 = vpop.f32.mrb[0].mxu0
    %v417 = vadd.f32 0.0, %v416
    %v418 = vpop.f32.mrb[0].mxu0
    %419 = vdwg.mxu0
    %vm420 = vcmp.gt.s32.totalorder %v51, 0
    %vm421 = vcmp.gt.s32.totalorder %v52, 0
    %vm422 = vcmp.gt.s32.totalorder %v51, 1
    %vm423 = vcmp.gt.s32.totalorder %v52, 1
    %vm424 = vcmp.gt.s32.totalorder %v51, 2
    %vm425 = vcmp.gt.s32.totalorder %v52, 2
    %vm426 = vcmp.gt.s32.totalorder %v51, 3
    %vm427 = vcmp.gt.s32.totalorder %v52, 3
    %vm428 = vcmp.gt.s32.totalorder %v51, 4
    %vm429 = vcmp.gt.s32.totalorder %v52, 4
    %vm430 = vcmp.gt.s32.totalorder %v51, 5
    %vm431 = vcmp.gt.s32.totalorder %v52, 5
    %vm432 = vcmp.gt.s32.totalorder %v51, 6
    %vm433 = vcmp.gt.s32.totalorder %v52, 6
    %vm434 = vcmp.gt.s32.totalorder %v51, 7
    %vm435 = vcmp.gt.s32.totalorder %v52, 7
    %v436 = vld [vmem:[%s4] sm:$0xf]
    %v437 = vld [vmem:[%s4 + $0x4] sm:$0xf]
    %v438 = vld [vmem:[%s4 + $0x8] sm:$0xf]
    %v439 = vld [vmem:[%s4 + $0xc] sm:$0xf]
    %v440 = vlaneseq
    %v441 = vshrl.u32 %v440, 7
    %v442 = vsub.s32 2, %v441
    %v443 = vrot.slane %v34, %v442
    %v448 = vunpack.c.l.b16 %v436
    %v449 = vunpack.c.l.b16 %v437
    %v450 = vunpack.c.l.b16 %v438
    %v451 = vunpack.c.l.b16 %v439
    %v452 = vpack.c.b16 %v449, %v448
    %v453 = vpack.c.b16 %v451, %v450
    %v457 = vsel %vm113, 0, 0
    %459 = vmatprep.subr.bf16.mxu0 0
    %460 = vmatpush1.bf16.msra.mxu0 %v452
    %461 = vmatprep.subr.bf16.mxu0 0
    %462 = vmatpush1.bf16.msra.mxu0 %v453
    %463 = vmatprep.subr.bf16.mxu0 0
    %464 = vmatpush1.bf16.msra.mxu0 0
    %465 = vmatprep.subr.bf16.mxu0 0
    %466 = vmatpush1.bf16.msra.mxu0 0
    %467 = vmatprep.subr.bf16.mxu0 0
    %468 = vmatpush1.bf16.msra.mxu0 0
    %469 = vmatprep.subr.bf16.mxu0 0
    %470 = vmatpush1.bf16.msra.mxu0 0
    %471 = vmatprep.subr.bf16.mxu0 0
    %472 = vmatpush1.bf16.msra.mxu0 0
    %473 = vmatprep.subr.bf16.mxu0 0
    %474 = vmatpush1.bf16.msra.mxu0 0
    %475 = vmatprep.subr.bf16.mxu0 0
    %476 = vmatpush1.bf16.msra.mxu0 0
    %477 = vmatprep.subr.bf16.mxu0 0
    %478 = vmatpush1.bf16.msra.mxu0 0
    %479 = vmatprep.subr.bf16.mxu0 0
    %480 = vmatpush1.bf16.msra.mxu0 0
    %481 = vmatprep.subr.bf16.mxu0 0
    %482 = vmatpush1.bf16.msra.mxu0 0
    %483 = vmatprep.subr.bf16.mxu0 0
    %484 = vmatpush1.bf16.msra.mxu0 0
    %485 = vmatprep.subr.bf16.mxu0 0
    %486 = vmatpush1.bf16.msra.mxu0 0
    %487 = vmatprep.subr.bf16.mxu0 0
    %488 = vmatpush1.bf16.msra.mxu0 0
    %489 = vmatprep.subr.bf16.mxu0 0
    %490 = vmatpush1.bf16.msra.mxu0 0
    %491 = vmatprep.mubr.bf16.mxu0 0
    %492 = vmatmul.mubr.bf16.gmra.mrb[0].mxu0 %v457
    %v493 = vpop.f32.mrb[0].mxu0
    %v494 = vadd.f32 0.0, %v493
    %v495 = vpop.f32.mrb[0].mxu0
    %v496 = vpop.f32.mrb[0].mxu0
    %v497 = vadd.f32 0.0, %v496
    %v498 = vpop.f32.mrb[0].mxu0
    %499 = vdwg.mxu0
    %v500 = vadd.f32 %v173, %v494
    %v501 = vadd.f32 %v176, %v497
    %v502 = vxor.u32 %v500, 2147483648
    %v503 = vxor.u32 %v501, 2147483648
    %v504 = vmul.f32 %v502, 1.442695
    %v505 = vpow.pop %v504
    %v506 = vmul.f32 %v503, 1.442695
    %v507 = vpow.pop %v506
    %v508 = vadd.f32 %v505, 1.0
    %v509 = vadd.f32 %v507, 1.0
    %v510 = vrcp.pop %v508
    %v511 = vmul.f32 1.0, %v510
    %v512 = vrcp.pop %v509
    %v513 = vmul.f32 1.0, %v512
    %515 = vrot.lane.b32.xlu0 %v443, 64
    %v516 = vpop.permute.xlu0 %515
    %v518 = vadd.f32 %v494, %v516
    %v519 = vadd.f32 %v497, %v516
    %522 = vrot.lane.b32.xlu0 %v518, 64
    %v523 = vpop.permute.xlu0 %522
    %524 = vrot.lane.b32.xlu0 %v519, 64
    %v525 = vpop.permute.xlu0 %524
    %v528 = vmul.f32 %v511, %v523
    %v529 = vmul.f32 %v513, %v525
    %532 = vrot.lane.b32.xlu0 %v528, 64
    %v533 = vpop.permute.xlu0 %532
    %534 = vrot.lane.b32.xlu0 %v529, 64
    %v535 = vpop.permute.xlu0 %534
    %v538 = vadd.f32 %v173, %v533
    %v539 = vadd.f32 %v176, %v535
    %v540 = vtanh.pop %v538
    %v541 = vtanh.pop %v539
    %v542 = vsub.f32 1.0, %v511
    %v543 = vsub.f32 1.0, %v513
    %546 = vrot.lane.b32.xlu0 %v540, 96
    %v547 = vpop.permute.xlu0 %546
    %548 = vrot.lane.b32.xlu0 %v541, 96
    %v549 = vpop.permute.xlu0 %548
    %v552 = vmul.f32 %v542, %v547
    %v553 = vmul.f32 %v543, %v549
    %v554 = vmul.f32 %v511, 0.0
    %v555 = vmul.f32 %v513, 0.0
    %v556 = vadd.f32 %v552, %v554
    %v557 = vadd.f32 %v553, %v555
    %v558 = vsel %vm420, 1, 0
    %v559 = vsel %vm421, 1, 0
    %560 = vset.pattern.permute.xlu0 0
    %561 = vperm.xlu0 %560, %v558
    %v562 = vpop.permute.xlu0 %561
    %563 = vset.pattern.permute.xlu0 0
    %564 = vperm.xlu0 %563, %v559
    %v565 = vpop.permute.xlu0 %564
    %vm566 = vcmp.eq.s32.totalorder %v562, 1
    %vm567 = vcmp.eq.s32.totalorder %v565, 1
    %v568 = vsel %vm566, %v556, 0.0
    %v569 = vsel %vm567, %v557, 0.0
    %v570 = vpack.c.bf16 %v569, %v568
    %572 = vrot.lane.b32.xlu0 %v570, 96
    %v573 = vpop.permute.xlu0 %572
    %v575 = vsel %vm113, %v573, 0
    %577 = vmatprep.subr.bf16.mxu0 0
    %578 = vmatpush1.bf16.msra.mxu0 %v452
    %579 = vmatprep.subr.bf16.mxu0 0
    %580 = vmatpush1.bf16.msra.mxu0 %v453
    %581 = vmatprep.subr.bf16.mxu0 0
    %582 = vmatpush1.bf16.msra.mxu0 0
    %583 = vmatprep.subr.bf16.mxu0 0
    %584 = vmatpush1.bf16.msra.mxu0 0
    %585 = vmatprep.subr.bf16.mxu0 0
    %586 = vmatpush1.bf16.msra.mxu0 0
    %587 = vmatprep.subr.bf16.mxu0 0
    %588 = vmatpush1.bf16.msra.mxu0 0
    %589 = vmatprep.subr.bf16.mxu0 0
    %590 = vmatpush1.bf16.msra.mxu0 0
    %591 = vmatprep.subr.bf16.mxu0 0
    %592 = vmatpush1.bf16.msra.mxu0 0
    %593 = vmatprep.subr.bf16.mxu0 0
    %594 = vmatpush1.bf16.msra.mxu0 0
    %595 = vmatprep.subr.bf16.mxu0 0
    %596 = vmatpush1.bf16.msra.mxu0 0
    %597 = vmatprep.subr.bf16.mxu0 0
    %598 = vmatpush1.bf16.msra.mxu0 0
    %599 = vmatprep.subr.bf16.mxu0 0
    %600 = vmatpush1.bf16.msra.mxu0 0
    %601 = vmatprep.subr.bf16.mxu0 0
    %602 = vmatpush1.bf16.msra.mxu0 0
    %603 = vmatprep.subr.bf16.mxu0 0
    %604 = vmatpush1.bf16.msra.mxu0 0
    %605 = vmatprep.subr.bf16.mxu0 0
    %606 = vmatpush1.bf16.msra.mxu0 0
    %607 = vmatprep.subr.bf16.mxu0 0
    %608 = vmatpush1.bf16.msra.mxu0 0
    %609 = vmatprep.mubr.bf16.mxu0 0
    %610 = vmatmul.mubr.bf16.gmra.mrb[0].mxu0 %v575
    %v611 = vpop.f32.mrb[0].mxu0
    %v612 = vadd.f32 0.0, %v611
    %v613 = vpop.f32.mrb[0].mxu0
    %v614 = vpop.f32.mrb[0].mxu0
    %v615 = vadd.f32 0.0, %v614
    %v616 = vpop.f32.mrb[0].mxu0
    %617 = vdwg.mxu0
    %v618 = vadd.f32 %v181, %v612
    %v619 = vadd.f32 %v184, %v615
    %v620 = vxor.u32 %v618, 2147483648
    %v621 = vxor.u32 %v619, 2147483648
    %v622 = vmul.f32 %v620, 1.442695
    %v623 = vpow.pop %v622
    %v624 = vmul.f32 %v621, 1.442695
    %v625 = vpow.pop %v624
    %v626 = vadd.f32 %v623, 1.0
    %v627 = vadd.f32 %v625, 1.0
    %v628 = vrcp.pop %v626
    %v629 = vmul.f32 1.0, %v628
    %v630 = vrcp.pop %v627
    %v631 = vmul.f32 1.0, %v630
    %v632 = vadd.f32 %v612, %v516
    %v633 = vadd.f32 %v615, %v516
    %636 = vrot.lane.b32.xlu0 %v632, 64
    %v637 = vpop.permute.xlu0 %636
    %638 = vrot.lane.b32.xlu0 %v633, 64
    %v639 = vpop.permute.xlu0 %638
    %v642 = vmul.f32 %v629, %v637
    %v643 = vmul.f32 %v631, %v639
    %646 = vrot.lane.b32.xlu0 %v642, 64
    %v647 = vpop.permute.xlu0 %646
    %648 = vrot.lane.b32.xlu0 %v643, 64
    %v649 = vpop.permute.xlu0 %648
    %v652 = vadd.f32 %v181, %v647
    %v653 = vadd.f32 %v184, %v649
    %v654 = vtanh.pop %v652
    %v655 = vtanh.pop %v653
    %v656 = vsub.f32 1.0, %v629
    %v657 = vsub.f32 1.0, %v631
    %660 = vrot.lane.b32.xlu0 %v654, 96
    %v661 = vpop.permute.xlu0 %660
    %662 = vrot.lane.b32.xlu0 %v655, 96
    %v663 = vpop.permute.xlu0 %662
    %v666 = vmul.f32 %v656, %v661
    %v667 = vmul.f32 %v657, %v663
    %v668 = vmul.f32 %v629, %v568
    %v669 = vmul.f32 %v631, %v569
    %v670 = vadd.f32 %v666, %v668
    %v671 = vadd.f32 %v667, %v669
    %v672 = vsel %vm422, 1, 0
    %v673 = vsel %vm423, 1, 0
    %674 = vset.pattern.permute.xlu0 0
    %675 = vperm.xlu0 %674, %v672
    %v676 = vpop.permute.xlu0 %675
    %677 = vset.pattern.permute.xlu0 0
    %678 = vperm.xlu0 %677, %v673
    %v679 = vpop.permute.xlu0 %678
    %vm680 = vcmp.eq.s32.totalorder %v676, 1
    %vm681 = vcmp.eq.s32.totalorder %v679, 1
    %v682 = vsel %vm680, %v670, %v568
    %v683 = vsel %vm681, %v671, %v569
    %v684 = vpack.c.bf16 %v683, %v682
    %686 = vrot.lane.b32.xlu0 %v684, 96
    %v687 = vpop.permute.xlu0 %686
    %v689 = vsel %vm113, %v687, 0
    %691 = vmatprep.subr.bf16.mxu0 0
    %692 = vmatpush1.bf16.msra.mxu0 %v452
    %693 = vmatprep.subr.bf16.mxu0 0
    %694 = vmatpush1.bf16.msra.mxu0 %v453
    %695 = vmatprep.subr.bf16.mxu0 0
    %696 = vmatpush1.bf16.msra.mxu0 0
    %697 = vmatprep.subr.bf16.mxu0 0
    %698 = vmatpush1.bf16.msra.mxu0 0
    %699 = vmatprep.subr.bf16.mxu0 0
    %700 = vmatpush1.bf16.msra.mxu0 0
    %701 = vmatprep.subr.bf16.mxu0 0
    %702 = vmatpush1.bf16.msra.mxu0 0
    %703 = vmatprep.subr.bf16.mxu0 0
    %704 = vmatpush1.bf16.msra.mxu0 0
    %705 = vmatprep.subr.bf16.mxu0 0
    %706 = vmatpush1.bf16.msra.mxu0 0
    %707 = vmatprep.subr.bf16.mxu0 0
    %708 = vmatpush1.bf16.msra.mxu0 0
    %709 = vmatprep.subr.bf16.mxu0 0
    %710 = vmatpush1.bf16.msra.mxu0 0
    %711 = vmatprep.subr.bf16.mxu0 0
    %712 = vmatpush1.bf16.msra.mxu0 0
    %713 = vmatprep.subr.bf16.mxu0 0
    %714 = vmatpush1.bf16.msra.mxu0 0
    %715 = vmatprep.subr.bf16.mxu0 0
    %716 = vmatpush1.bf16.msra.mxu0 0
    %717 = vmatprep.subr.bf16.mxu0 0
    %718 = vmatpush1.bf16.msra.mxu0 0
    %719 = vmatprep.subr.bf16.mxu0 0
    %720 = vmatpush1.bf16.msra.mxu0 0
    %721 = vmatprep.subr.bf16.mxu0 0
    %722 = vmatpush1.bf16.msra.mxu0 0
    %723 = vmatprep.mubr.bf16.mxu0 0
    %724 = vmatmul.mubr.bf16.gmra.mrb[0].mxu0 %v689
    %v725 = vpop.f32.mrb[0].mxu0
    %v726 = vadd.f32 0.0, %v725
    %v727 = vpop.f32.mrb[0].mxu0
    %v728 = vpop.f32.mrb[0].mxu0
    %v729 = vadd.f32 0.0, %v728
    %v730 = vpop.f32.mrb[0].mxu0
    %731 = vdwg.mxu0
    %v732 = vadd.f32 %v189, %v726
    %v733 = vadd.f32 %v192, %v729
    %v734 = vxor.u32 %v732, 2147483648
    %v735 = vxor.u32 %v733, 2147483648
    %v736 = vmul.f32 %v734, 1.442695
    %v737 = vpow.pop %v736
    %v738 = vmul.f32 %v735, 1.442695
    %v739 = vpow.pop %v738
    %v740 = vadd.f32 %v737, 1.0
    %v741 = vadd.f32 %v739, 1.0
    %v742 = vrcp.pop %v740
    %v743 = vmul.f32 1.0, %v742
    %v744 = vrcp.pop %v741
    %v745 = vmul.f32 1.0, %v744
    %v746 = vadd.f32 %v726, %v516
    %v747 = vadd.f32 %v729, %v516
    %750 = vrot.lane.b32.xlu0 %v746, 64
    %v751 = vpop.permute.xlu0 %750
    %752 = vrot.lane.b32.xlu0 %v747, 64
    %v753 = vpop.permute.xlu0 %752
    %v756 = vmul.f32 %v743, %v751
    %v757 = vmul.f32 %v745, %v753
    %760 = vrot.lane.b32.xlu0 %v756, 64
    %v761 = vpop.permute.xlu0 %760
    %762 = vrot.lane.b32.xlu0 %v757, 64
    %v763 = vpop.permute.xlu0 %762
    %v766 = vadd.f32 %v189, %v761
    %v767 = vadd.f32 %v192, %v763
    %v768 = vtanh.pop %v766
    %v769 = vtanh.pop %v767
    %v770 = vsub.f32 1.0, %v743
    %v771 = vsub.f32 1.0, %v745
    %774 = vrot.lane.b32.xlu0 %v768, 96
    %v775 = vpop.permute.xlu0 %774
    %776 = vrot.lane.b32.xlu0 %v769, 96
    %v777 = vpop.permute.xlu0 %776
    %v780 = vmul.f32 %v770, %v775
    %v781 = vmul.f32 %v771, %v777
    %v782 = vmul.f32 %v743, %v682
    %v783 = vmul.f32 %v745, %v683
    %v784 = vadd.f32 %v780, %v782
    %v785 = vadd.f32 %v781, %v783
    %v786 = vsel %vm424, 1, 0
    %v787 = vsel %vm425, 1, 0
    %788 = vset.pattern.permute.xlu0 0
    %789 = vperm.xlu0 %788, %v786
    %v790 = vpop.permute.xlu0 %789
    %791 = vset.pattern.permute.xlu0 0
    %792 = vperm.xlu0 %791, %v787
    %v793 = vpop.permute.xlu0 %792
    %vm794 = vcmp.eq.s32.totalorder %v790, 1
    %vm795 = vcmp.eq.s32.totalorder %v793, 1
    %v796 = vsel %vm794, %v784, %v682
    %v797 = vsel %vm795, %v785, %v683
    %v798 = vpack.c.bf16 %v797, %v796
    %800 = vrot.lane.b32.xlu0 %v798, 96
    %v801 = vpop.permute.xlu0 %800
    %v803 = vsel %vm113, %v801, 0
    %805 = vmatprep.subr.bf16.mxu0 0
    %806 = vmatpush1.bf16.msra.mxu0 %v452
    %807 = vmatprep.subr.bf16.mxu0 0
    %808 = vmatpush1.bf16.msra.mxu0 %v453
    %809 = vmatprep.subr.bf16.mxu0 0
    %810 = vmatpush1.bf16.msra.mxu0 0
    %811 = vmatprep.subr.bf16.mxu0 0
    %812 = vmatpush1.bf16.msra.mxu0 0
    %813 = vmatprep.subr.bf16.mxu0 0
    %814 = vmatpush1.bf16.msra.mxu0 0
    %815 = vmatprep.subr.bf16.mxu0 0
    %816 = vmatpush1.bf16.msra.mxu0 0
    %817 = vmatprep.subr.bf16.mxu0 0
    %818 = vmatpush1.bf16.msra.mxu0 0
    %819 = vmatprep.subr.bf16.mxu0 0
    %820 = vmatpush1.bf16.msra.mxu0 0
    %821 = vmatprep.subr.bf16.mxu0 0
    %822 = vmatpush1.bf16.msra.mxu0 0
    %823 = vmatprep.subr.bf16.mxu0 0
    %824 = vmatpush1.bf16.msra.mxu0 0
    %825 = vmatprep.subr.bf16.mxu0 0
    %826 = vmatpush1.bf16.msra.mxu0 0
    %827 = vmatprep.subr.bf16.mxu0 0
    %828 = vmatpush1.bf16.msra.mxu0 0
    %829 = vmatprep.subr.bf16.mxu0 0
    %830 = vmatpush1.bf16.msra.mxu0 0
    %831 = vmatprep.subr.bf16.mxu0 0
    %832 = vmatpush1.bf16.msra.mxu0 0
    %833 = vmatprep.subr.bf16.mxu0 0
    %834 = vmatpush1.bf16.msra.mxu0 0
    %835 = vmatprep.subr.bf16.mxu0 0
    %836 = vmatpush1.bf16.msra.mxu0 0
    %837 = vmatprep.mubr.bf16.mxu0 0
    %838 = vmatmul.mubr.bf16.gmra.mrb[0].mxu0 %v803
    %v839 = vpop.f32.mrb[0].mxu0
    %v840 = vadd.f32 0.0, %v839
    %v841 = vpop.f32.mrb[0].mxu0
    %v842 = vpop.f32.mrb[0].mxu0
    %v843 = vadd.f32 0.0, %v842
    %v844 = vpop.f32.mrb[0].mxu0
    %845 = vdwg.mxu0
    %v846 = vadd.f32 %v197, %v840
    %v847 = vadd.f32 %v200, %v843
    %v848 = vxor.u32 %v846, 2147483648
    %v849 = vxor.u32 %v847, 2147483648
    %v850 = vmul.f32 %v848, 1.442695
    %v851 = vpow.pop %v850
    %v852 = vmul.f32 %v849, 1.442695
    %v853 = vpow.pop %v852
    %v854 = vadd.f32 %v851, 1.0
    %v855 = vadd.f32 %v853, 1.0
    %v856 = vrcp.pop %v854
    %v857 = vmul.f32 1.0, %v856
    %v858 = vrcp.pop %v855
    %v859 = vmul.f32 1.0, %v858
    %v860 = vadd.f32 %v840, %v516
    %v861 = vadd.f32 %v843, %v516
    %864 = vrot.lane.b32.xlu0 %v860, 64
    %v865 = vpop.permute.xlu0 %864
    %866 = vrot.lane.b32.xlu0 %v861, 64
    %v867 = vpop.permute.xlu0 %866
    %v870 = vmul.f32 %v857, %v865
    %v871 = vmul.f32 %v859, %v867
    %874 = vrot.lane.b32.xlu0 %v870, 64
    %v875 = vpop.permute.xlu0 %874
    %876 = vrot.lane.b32.xlu0 %v871, 64
    %v877 = vpop.permute.xlu0 %876
    %v880 = vadd.f32 %v197, %v875
    %v881 = vadd.f32 %v200, %v877
    %v882 = vtanh.pop %v880
    %v883 = vtanh.pop %v881
    %v884 = vsub.f32 1.0, %v857
    %v885 = vsub.f32 1.0, %v859
    %888 = vrot.lane.b32.xlu0 %v882, 96
    %v889 = vpop.permute.xlu0 %888
    %890 = vrot.lane.b32.xlu0 %v883, 96
    %v891 = vpop.permute.xlu0 %890
    %v894 = vmul.f32 %v884, %v889
    %v895 = vmul.f32 %v885, %v891
    %v896 = vmul.f32 %v857, %v796
    %v897 = vmul.f32 %v859, %v797
    %v898 = vadd.f32 %v894, %v896
    %v899 = vadd.f32 %v895, %v897
    %v900 = vsel %vm426, 1, 0
    %v901 = vsel %vm427, 1, 0
    %902 = vset.pattern.permute.xlu0 0
    %903 = vperm.xlu0 %902, %v900
    %v904 = vpop.permute.xlu0 %903
    %905 = vset.pattern.permute.xlu0 0
    %906 = vperm.xlu0 %905, %v901
    %v907 = vpop.permute.xlu0 %906
    %vm908 = vcmp.eq.s32.totalorder %v904, 1
    %vm909 = vcmp.eq.s32.totalorder %v907, 1
    %v910 = vsel %vm908, %v898, %v796
    %v911 = vsel %vm909, %v899, %v797
    %v912 = vpack.c.bf16 %v911, %v910
    %914 = vrot.lane.b32.xlu0 %v912, 96
    %v915 = vpop.permute.xlu0 %914
    %v917 = vsel %vm113, %v915, 0
    %919 = vmatprep.subr.bf16.mxu0 0
    %920 = vmatpush1.bf16.msra.mxu0 %v452
    %921 = vmatprep.subr.bf16.mxu0 0
    %922 = vmatpush1.bf16.msra.mxu0 %v453
    %923 = vmatprep.subr.bf16.mxu0 0
    %924 = vmatpush1.bf16.msra.mxu0 0
    %925 = vmatprep.subr.bf16.mxu0 0
    %926 = vmatpush1.bf16.msra.mxu0 0
    %927 = vmatprep.subr.bf16.mxu0 0
    %928 = vmatpush1.bf16.msra.mxu0 0
    %929 = vmatprep.subr.bf16.mxu0 0
    %930 = vmatpush1.bf16.msra.mxu0 0
    %931 = vmatprep.subr.bf16.mxu0 0
    %932 = vmatpush1.bf16.msra.mxu0 0
    %933 = vmatprep.subr.bf16.mxu0 0
    %934 = vmatpush1.bf16.msra.mxu0 0
    %935 = vmatprep.subr.bf16.mxu0 0
    %936 = vmatpush1.bf16.msra.mxu0 0
    %937 = vmatprep.subr.bf16.mxu0 0
    %938 = vmatpush1.bf16.msra.mxu0 0
    %939 = vmatprep.subr.bf16.mxu0 0
    %940 = vmatpush1.bf16.msra.mxu0 0
    %941 = vmatprep.subr.bf16.mxu0 0
    %942 = vmatpush1.bf16.msra.mxu0 0
    %943 = vmatprep.subr.bf16.mxu0 0
    %944 = vmatpush1.bf16.msra.mxu0 0
    %945 = vmatprep.subr.bf16.mxu0 0
    %946 = vmatpush1.bf16.msra.mxu0 0
    %947 = vmatprep.subr.bf16.mxu0 0
    %948 = vmatpush1.bf16.msra.mxu0 0
    %949 = vmatprep.subr.bf16.mxu0 0
    %950 = vmatpush1.bf16.msra.mxu0 0
    %951 = vmatprep.mubr.bf16.mxu0 0
    %952 = vmatmul.mubr.bf16.gmra.mrb[0].mxu0 %v917
    %v953 = vpop.f32.mrb[0].mxu0
    %v954 = vadd.f32 0.0, %v953
    %v955 = vpop.f32.mrb[0].mxu0
    %v956 = vpop.f32.mrb[0].mxu0
    %v957 = vadd.f32 0.0, %v956
    %v958 = vpop.f32.mrb[0].mxu0
    %959 = vdwg.mxu0
    %v960 = vadd.f32 %v205, %v954
    %v961 = vadd.f32 %v208, %v957
    %v962 = vxor.u32 %v960, 2147483648
    %v963 = vxor.u32 %v961, 2147483648
    %v964 = vmul.f32 %v962, 1.442695
    %v965 = vpow.pop %v964
    %v966 = vmul.f32 %v963, 1.442695
    %v967 = vpow.pop %v966
    %v968 = vadd.f32 %v965, 1.0
    %v969 = vadd.f32 %v967, 1.0
    %v970 = vrcp.pop %v968
    %v971 = vmul.f32 1.0, %v970
    %v972 = vrcp.pop %v969
    %v973 = vmul.f32 1.0, %v972
    %v974 = vadd.f32 %v954, %v516
    %v975 = vadd.f32 %v957, %v516
    %978 = vrot.lane.b32.xlu0 %v974, 64
    %v979 = vpop.permute.xlu0 %978
    %980 = vrot.lane.b32.xlu0 %v975, 64
    %v981 = vpop.permute.xlu0 %980
    %v984 = vmul.f32 %v971, %v979
    %v985 = vmul.f32 %v973, %v981
    %988 = vrot.lane.b32.xlu0 %v984, 64
    %v989 = vpop.permute.xlu0 %988
    %990 = vrot.lane.b32.xlu0 %v985, 64
    %v991 = vpop.permute.xlu0 %990
    %v994 = vadd.f32 %v205, %v989
    %v995 = vadd.f32 %v208, %v991
    %v996 = vtanh.pop %v994
    %v997 = vtanh.pop %v995
    %v998 = vsub.f32 1.0, %v971
    %v999 = vsub.f32 1.0, %v973
    %1002 = vrot.lane.b32.xlu0 %v996, 96
    %v1003 = vpop.permute.xlu0 %1002
    %1004 = vrot.lane.b32.xlu0 %v997, 96
    %v1005 = vpop.permute.xlu0 %1004
    %v1008 = vmul.f32 %v998, %v1003
    %v1009 = vmul.f32 %v999, %v1005
    %v1010 = vmul.f32 %v971, %v910
    %v1011 = vmul.f32 %v973, %v911
    %v1012 = vadd.f32 %v1008, %v1010
    %v1013 = vadd.f32 %v1009, %v1011
    %v1014 = vsel %vm428, 1, 0
    %v1015 = vsel %vm429, 1, 0
    %1016 = vset.pattern.permute.xlu0 0
    %1017 = vperm.xlu0 %1016, %v1014
    %v1018 = vpop.permute.xlu0 %1017
    %1019 = vset.pattern.permute.xlu0 0
    %1020 = vperm.xlu0 %1019, %v1015
    %v1021 = vpop.permute.xlu0 %1020
    %vm1022 = vcmp.eq.s32.totalorder %v1018, 1
    %vm1023 = vcmp.eq.s32.totalorder %v1021, 1
    %v1024 = vsel %vm1022, %v1012, %v910
    %v1025 = vsel %vm1023, %v1013, %v911
    %v1026 = vpack.c.bf16 %v1025, %v1024
    %1028 = vrot.lane.b32.xlu0 %v1026, 96
    %v1029 = vpop.permute.xlu0 %1028
    %v1031 = vsel %vm113, %v1029, 0
    %1033 = vmatprep.subr.bf16.mxu0 0
    %1034 = vmatpush1.bf16.msra.mxu0 %v452
    %1035 = vmatprep.subr.bf16.mxu0 0
    %1036 = vmatpush1.bf16.msra.mxu0 %v453
    %1037 = vmatprep.subr.bf16.mxu0 0
    %1038 = vmatpush1.bf16.msra.mxu0 0
    %1039 = vmatprep.subr.bf16.mxu0 0
    %1040 = vmatpush1.bf16.msra.mxu0 0
    %1041 = vmatprep.subr.bf16.mxu0 0
    %1042 = vmatpush1.bf16.msra.mxu0 0
    %1043 = vmatprep.subr.bf16.mxu0 0
    %1044 = vmatpush1.bf16.msra.mxu0 0
    %1045 = vmatprep.subr.bf16.mxu0 0
    %1046 = vmatpush1.bf16.msra.mxu0 0
    %1047 = vmatprep.subr.bf16.mxu0 0
    %1048 = vmatpush1.bf16.msra.mxu0 0
    %1049 = vmatprep.subr.bf16.mxu0 0
    %1050 = vmatpush1.bf16.msra.mxu0 0
    %1051 = vmatprep.subr.bf16.mxu0 0
    %1052 = vmatpush1.bf16.msra.mxu0 0
    %1053 = vmatprep.subr.bf16.mxu0 0
    %1054 = vmatpush1.bf16.msra.mxu0 0
    %1055 = vmatprep.subr.bf16.mxu0 0
    %1056 = vmatpush1.bf16.msra.mxu0 0
    %1057 = vmatprep.subr.bf16.mxu0 0
    %1058 = vmatpush1.bf16.msra.mxu0 0
    %1059 = vmatprep.subr.bf16.mxu0 0
    %1060 = vmatpush1.bf16.msra.mxu0 0
    %1061 = vmatprep.subr.bf16.mxu0 0
    %1062 = vmatpush1.bf16.msra.mxu0 0
    %1063 = vmatprep.subr.bf16.mxu0 0
    %1064 = vmatpush1.bf16.msra.mxu0 0
    %1065 = vmatprep.mubr.bf16.mxu0 0
    %1066 = vmatmul.mubr.bf16.gmra.mrb[0].mxu0 %v1031
    %v1067 = vpop.f32.mrb[0].mxu0
    %v1068 = vadd.f32 0.0, %v1067
    %v1069 = vpop.f32.mrb[0].mxu0
    %v1070 = vpop.f32.mrb[0].mxu0
    %v1071 = vadd.f32 0.0, %v1070
    %v1072 = vpop.f32.mrb[0].mxu0
    %1073 = vdwg.mxu0
    %v1074 = vadd.f32 %v213, %v1068
    %v1075 = vadd.f32 %v216, %v1071
    %v1076 = vxor.u32 %v1074, 2147483648
    %v1077 = vxor.u32 %v1075, 2147483648
    %v1078 = vmul.f32 %v1076, 1.442695
    %v1079 = vpow.pop %v1078
    %v1080 = vmul.f32 %v1077, 1.442695
    %v1081 = vpow.pop %v1080
    %v1082 = vadd.f32 %v1079, 1.0
    %v1083 = vadd.f32 %v1081, 1.0
    %v1084 = vrcp.pop %v1082
    %v1085 = vmul.f32 1.0, %v1084
    %v1086 = vrcp.pop %v1083
    %v1087 = vmul.f32 1.0, %v1086
    %v1088 = vadd.f32 %v1068, %v516
    %v1089 = vadd.f32 %v1071, %v516
    %1092 = vrot.lane.b32.xlu0 %v1088, 64
    %v1093 = vpop.permute.xlu0 %1092
    %1094 = vrot.lane.b32.xlu0 %v1089, 64
    %v1095 = vpop.permute.xlu0 %1094
    %v1098 = vmul.f32 %v1085, %v1093
    %v1099 = vmul.f32 %v1087, %v1095
    %1102 = vrot.lane.b32.xlu0 %v1098, 64
    %v1103 = vpop.permute.xlu0 %1102
    %1104 = vrot.lane.b32.xlu0 %v1099, 64
    %v1105 = vpop.permute.xlu0 %1104
    %v1108 = vadd.f32 %v213, %v1103
    %v1109 = vadd.f32 %v216, %v1105
    %v1110 = vtanh.pop %v1108
    %v1111 = vtanh.pop %v1109
    %v1112 = vsub.f32 1.0, %v1085
    %v1113 = vsub.f32 1.0, %v1087
    %1116 = vrot.lane.b32.xlu0 %v1110, 96
    %v1117 = vpop.permute.xlu0 %1116
    %1118 = vrot.lane.b32.xlu0 %v1111, 96
    %v1119 = vpop.permute.xlu0 %1118
    %v1122 = vmul.f32 %v1112, %v1117
    %v1123 = vmul.f32 %v1113, %v1119
    %v1124 = vmul.f32 %v1085, %v1024
    %v1125 = vmul.f32 %v1087, %v1025
    %v1126 = vadd.f32 %v1122, %v1124
    %v1127 = vadd.f32 %v1123, %v1125
    %v1128 = vsel %vm430, 1, 0
    %v1129 = vsel %vm431, 1, 0
    %1130 = vset.pattern.permute.xlu0 0
    %1131 = vperm.xlu0 %1130, %v1128
    %v1132 = vpop.permute.xlu0 %1131
    %1133 = vset.pattern.permute.xlu0 0
    %1134 = vperm.xlu0 %1133, %v1129
    %v1135 = vpop.permute.xlu0 %1134
    %vm1136 = vcmp.eq.s32.totalorder %v1132, 1
    %vm1137 = vcmp.eq.s32.totalorder %v1135, 1
    %v1138 = vsel %vm1136, %v1126, %v1024
    %v1139 = vsel %vm1137, %v1127, %v1025
    %v1140 = vpack.c.bf16 %v1139, %v1138
    %1142 = vrot.lane.b32.xlu0 %v1140, 96
    %v1143 = vpop.permute.xlu0 %1142
    %v1145 = vsel %vm113, %v1143, 0
    %1147 = vmatprep.subr.bf16.mxu0 0
    %1148 = vmatpush1.bf16.msra.mxu0 %v452
    %1149 = vmatprep.subr.bf16.mxu0 0
    %1150 = vmatpush1.bf16.msra.mxu0 %v453
    %1151 = vmatprep.subr.bf16.mxu0 0
    %1152 = vmatpush1.bf16.msra.mxu0 0
    %1153 = vmatprep.subr.bf16.mxu0 0
    %1154 = vmatpush1.bf16.msra.mxu0 0
    %1155 = vmatprep.subr.bf16.mxu0 0
    %1156 = vmatpush1.bf16.msra.mxu0 0
    %1157 = vmatprep.subr.bf16.mxu0 0
    %1158 = vmatpush1.bf16.msra.mxu0 0
    %1159 = vmatprep.subr.bf16.mxu0 0
    %1160 = vmatpush1.bf16.msra.mxu0 0
    %1161 = vmatprep.subr.bf16.mxu0 0
    %1162 = vmatpush1.bf16.msra.mxu0 0
    %1163 = vmatprep.subr.bf16.mxu0 0
    %1164 = vmatpush1.bf16.msra.mxu0 0
    %1165 = vmatprep.subr.bf16.mxu0 0
    %1166 = vmatpush1.bf16.msra.mxu0 0
    %1167 = vmatprep.subr.bf16.mxu0 0
    %1168 = vmatpush1.bf16.msra.mxu0 0
    %1169 = vmatprep.subr.bf16.mxu0 0
    %1170 = vmatpush1.bf16.msra.mxu0 0
    %1171 = vmatprep.subr.bf16.mxu0 0
    %1172 = vmatpush1.bf16.msra.mxu0 0
    %1173 = vmatprep.subr.bf16.mxu0 0
    %1174 = vmatpush1.bf16.msra.mxu0 0
    %1175 = vmatprep.subr.bf16.mxu0 0
    %1176 = vmatpush1.bf16.msra.mxu0 0
    %1177 = vmatprep.subr.bf16.mxu0 0
    %1178 = vmatpush1.bf16.msra.mxu0 0
    %1179 = vmatprep.mubr.bf16.mxu0 0
    %1180 = vmatmul.mubr.bf16.gmra.mrb[0].mxu0 %v1145
    %v1181 = vpop.f32.mrb[0].mxu0
    %v1182 = vadd.f32 0.0, %v1181
    %v1183 = vpop.f32.mrb[0].mxu0
    %v1184 = vpop.f32.mrb[0].mxu0
    %v1185 = vadd.f32 0.0, %v1184
    %v1186 = vpop.f32.mrb[0].mxu0
    %1187 = vdwg.mxu0
    %v1188 = vadd.f32 %v221, %v1182
    %v1189 = vadd.f32 %v224, %v1185
    %v1190 = vxor.u32 %v1188, 2147483648
    %v1191 = vxor.u32 %v1189, 2147483648
    %v1192 = vmul.f32 %v1190, 1.442695
    %v1193 = vpow.pop %v1192
    %v1194 = vmul.f32 %v1191, 1.442695
    %v1195 = vpow.pop %v1194
    %v1196 = vadd.f32 %v1193, 1.0
    %v1197 = vadd.f32 %v1195, 1.0
    %v1198 = vrcp.pop %v1196
    %v1199 = vmul.f32 1.0, %v1198
    %v1200 = vrcp.pop %v1197
    %v1201 = vmul.f32 1.0, %v1200
    %v1202 = vadd.f32 %v1182, %v516
    %v1203 = vadd.f32 %v1185, %v516
    %1206 = vrot.lane.b32.xlu0 %v1202, 64
    %v1207 = vpop.permute.xlu0 %1206
    %1208 = vrot.lane.b32.xlu0 %v1203, 64
    %v1209 = vpop.permute.xlu0 %1208
    %v1212 = vmul.f32 %v1199, %v1207
    %v1213 = vmul.f32 %v1201, %v1209
    %1216 = vrot.lane.b32.xlu0 %v1212, 64
    %v1217 = vpop.permute.xlu0 %1216
    %1218 = vrot.lane.b32.xlu0 %v1213, 64
    %v1219 = vpop.permute.xlu0 %1218
    %v1222 = vadd.f32 %v221, %v1217
    %v1223 = vadd.f32 %v224, %v1219
    %v1224 = vtanh.pop %v1222
    %v1225 = vtanh.pop %v1223
    %v1226 = vsub.f32 1.0, %v1199
    %v1227 = vsub.f32 1.0, %v1201
    %1230 = vrot.lane.b32.xlu0 %v1224, 96
    %v1231 = vpop.permute.xlu0 %1230
    %1232 = vrot.lane.b32.xlu0 %v1225, 96
    %v1233 = vpop.permute.xlu0 %1232
    %v1236 = vmul.f32 %v1226, %v1231
    %v1237 = vmul.f32 %v1227, %v1233
    %v1238 = vmul.f32 %v1199, %v1138
    %v1239 = vmul.f32 %v1201, %v1139
    %v1240 = vadd.f32 %v1236, %v1238
    %v1241 = vadd.f32 %v1237, %v1239
    %v1242 = vsel %vm432, 1, 0
    %v1243 = vsel %vm433, 1, 0
    %1244 = vset.pattern.permute.xlu0 0
    %1245 = vperm.xlu0 %1244, %v1242
    %v1246 = vpop.permute.xlu0 %1245
    %1247 = vset.pattern.permute.xlu0 0
    %1248 = vperm.xlu0 %1247, %v1243
    %v1249 = vpop.permute.xlu0 %1248
    %vm1250 = vcmp.eq.s32.totalorder %v1246, 1
    %vm1251 = vcmp.eq.s32.totalorder %v1249, 1
    %v1252 = vsel %vm1250, %v1240, %v1138
    %v1253 = vsel %vm1251, %v1241, %v1139
    %v1254 = vpack.c.bf16 %v1253, %v1252
    %1256 = vrot.lane.b32.xlu0 %v1254, 96
    %v1257 = vpop.permute.xlu0 %1256
    %v1259 = vsel %vm113, %v1257, 0
    %1261 = vmatprep.subr.bf16.mxu0 0
    %1262 = vmatpush1.bf16.msra.mxu0 %v452
    %1263 = vmatprep.subr.bf16.mxu0 0
    %1264 = vmatpush1.bf16.msra.mxu0 %v453
    %1265 = vmatprep.subr.bf16.mxu0 0
    %1266 = vmatpush1.bf16.msra.mxu0 0
    %1267 = vmatprep.subr.bf16.mxu0 0
    %1268 = vmatpush1.bf16.msra.mxu0 0
    %1269 = vmatprep.subr.bf16.mxu0 0
    %1270 = vmatpush1.bf16.msra.mxu0 0
    %1271 = vmatprep.subr.bf16.mxu0 0
    %1272 = vmatpush1.bf16.msra.mxu0 0
    %1273 = vmatprep.subr.bf16.mxu0 0
    %1274 = vmatpush1.bf16.msra.mxu0 0
    %1275 = vmatprep.subr.bf16.mxu0 0
    %1276 = vmatpush1.bf16.msra.mxu0 0
    %1277 = vmatprep.subr.bf16.mxu0 0
    %1278 = vmatpush1.bf16.msra.mxu0 0
    %1279 = vmatprep.subr.bf16.mxu0 0
    %1280 = vmatpush1.bf16.msra.mxu0 0
    %1281 = vmatprep.subr.bf16.mxu0 0
    %1282 = vmatpush1.bf16.msra.mxu0 0
    %1283 = vmatprep.subr.bf16.mxu0 0
    %1284 = vmatpush1.bf16.msra.mxu0 0
    %1285 = vmatprep.subr.bf16.mxu0 0
    %1286 = vmatpush1.bf16.msra.mxu0 0
    %1287 = vmatprep.subr.bf16.mxu0 0
    %1288 = vmatpush1.bf16.msra.mxu0 0
    %1289 = vmatprep.subr.bf16.mxu0 0
    %1290 = vmatpush1.bf16.msra.mxu0 0
    %1291 = vmatprep.subr.bf16.mxu0 0
    %1292 = vmatpush1.bf16.msra.mxu0 0
    %1293 = vmatprep.mubr.bf16.mxu0 0
    %1294 = vmatmul.mubr.bf16.gmra.mrb[0].mxu0 %v1259
    %v1295 = vpop.f32.mrb[0].mxu0
    %v1296 = vadd.f32 0.0, %v1295
    %v1297 = vpop.f32.mrb[0].mxu0
    %v1298 = vpop.f32.mrb[0].mxu0
    %v1299 = vadd.f32 0.0, %v1298
    %v1300 = vpop.f32.mrb[0].mxu0
    %1301 = vdwg.mxu0
    %v1302 = vadd.f32 %v229, %v1296
    %v1303 = vadd.f32 %v232, %v1299
    %v1304 = vxor.u32 %v1302, 2147483648
    %v1305 = vxor.u32 %v1303, 2147483648
    %v1306 = vmul.f32 %v1304, 1.442695
    %v1307 = vpow.pop %v1306
    %v1308 = vmul.f32 %v1305, 1.442695
    %v1309 = vpow.pop %v1308
    %v1310 = vadd.f32 %v1307, 1.0
    %v1311 = vadd.f32 %v1309, 1.0
    %v1312 = vrcp.pop %v1310
    %v1313 = vmul.f32 1.0, %v1312
    %v1314 = vrcp.pop %v1311
    %v1315 = vmul.f32 1.0, %v1314
    %v1316 = vadd.f32 %v1296, %v516
    %v1317 = vadd.f32 %v1299, %v516
    %1320 = vrot.lane.b32.xlu0 %v1316, 64
    %v1321 = vpop.permute.xlu0 %1320
    %1322 = vrot.lane.b32.xlu0 %v1317, 64
    %v1323 = vpop.permute.xlu0 %1322
    %v1326 = vmul.f32 %v1313, %v1321
    %v1327 = vmul.f32 %v1315, %v1323
    %1330 = vrot.lane.b32.xlu0 %v1326, 64
    %v1331 = vpop.permute.xlu0 %1330
    %1332 = vrot.lane.b32.xlu0 %v1327, 64
    %v1333 = vpop.permute.xlu0 %1332
    %v1336 = vadd.f32 %v229, %v1331
    %v1337 = vadd.f32 %v232, %v1333
    %v1338 = vtanh.pop %v1336
    %v1339 = vtanh.pop %v1337
    %v1340 = vsub.f32 1.0, %v1313
    %v1341 = vsub.f32 1.0, %v1315
    %1344 = vrot.lane.b32.xlu0 %v1338, 96
    %v1345 = vpop.permute.xlu0 %1344
    %1346 = vrot.lane.b32.xlu0 %v1339, 96
    %v1347 = vpop.permute.xlu0 %1346
    %v1350 = vmul.f32 %v1340, %v1345
    %v1351 = vmul.f32 %v1341, %v1347
    %v1352 = vmul.f32 %v1313, %v1252
    %v1353 = vmul.f32 %v1315, %v1253
    %v1354 = vadd.f32 %v1350, %v1352
    %v1355 = vadd.f32 %v1351, %v1353
    %v1356 = vsel %vm434, 1, 0
    %v1357 = vsel %vm435, 1, 0
    %1358 = vset.pattern.permute.xlu0 0
    %1359 = vperm.xlu0 %1358, %v1356
    %v1360 = vpop.permute.xlu0 %1359
    %1361 = vset.pattern.permute.xlu0 0
    %1362 = vperm.xlu0 %1361, %v1357
    %v1363 = vpop.permute.xlu0 %1362
    %vm1364 = vcmp.eq.s32.totalorder %v1360, 1
    %vm1365 = vcmp.eq.s32.totalorder %v1363, 1
    %v1366 = vsel %vm1364, %v1354, %v1252
    %v1367 = vsel %vm1365, %v1355, %v1253
    %v1368 = vld [vmem:[%s2] sm:$0xf]
    %v1369 = vld [vmem:[%s2 + $0x4] sm:$0xf]
    %v1370 = vld [vmem:[%s5] sm:$0xf]
    %v1371 = vld [vmem:[%s5 + $0x4] sm:$0xf]
    %v1372 = vld [vmem:[%s5 + $0x8] sm:$0xf]
    %v1373 = vld [vmem:[%s5 + $0xc] sm:$0xf]
    %v1374 = vlaneseq
    %v1375 = vshrl.u32 %v1374, 7
    %v1376 = vsub.s32 1, %v1375
    %v1377 = vrot.slane %v34, %v1376
    %v1380 = vunpack.c.l.b16 %v1368
    %v1381 = vunpack.c.l.b16 %v1369
    %v1382 = vpack.c.b16 %v1381, %v1380
    %v1387 = vunpack.c.l.b16 %v1370
    %v1388 = vunpack.c.l.b16 %v1371
    %v1389 = vunpack.c.l.b16 %v1372
    %v1390 = vunpack.c.l.b16 %v1373
    %v1391 = vpack.c.b16 %v1388, %v1387
    %v1392 = vpack.c.b16 %v1390, %v1389
    %v1396 = vsel %vm113, %v1382, 0
    %1398 = vmatprep.subr.bf16.mxu0 0
    %1399 = vmatpush1.bf16.msra.mxu0 %v1391
    %1400 = vmatprep.subr.bf16.mxu0 0
    %1401 = vmatpush1.bf16.msra.mxu0 %v1392
    %1402 = vmatprep.subr.bf16.mxu0 0
    %1403 = vmatpush1.bf16.msra.mxu0 0
    %1404 = vmatprep.subr.bf16.mxu0 0
    %1405 = vmatpush1.bf16.msra.mxu0 0
    %1406 = vmatprep.subr.bf16.mxu0 0
    %1407 = vmatpush1.bf16.msra.mxu0 0
    %1408 = vmatprep.subr.bf16.mxu0 0
    %1409 = vmatpush1.bf16.msra.mxu0 0
    %1410 = vmatprep.subr.bf16.mxu0 0
    %1411 = vmatpush1.bf16.msra.mxu0 0
    %1412 = vmatprep.subr.bf16.mxu0 0
    %1413 = vmatpush1.bf16.msra.mxu0 0
    %1414 = vmatprep.subr.bf16.mxu0 0
    %1415 = vmatpush1.bf16.msra.mxu0 0
    %1416 = vmatprep.subr.bf16.mxu0 0
    %1417 = vmatpush1.bf16.msra.mxu0 0
    %1418 = vmatprep.subr.bf16.mxu0 0
    %1419 = vmatpush1.bf16.msra.mxu0 0
    %1420 = vmatprep.subr.bf16.mxu0 0
    %1421 = vmatpush1.bf16.msra.mxu0 0
    %1422 = vmatprep.subr.bf16.mxu0 0
    %1423 = vmatpush1.bf16.msra.mxu0 0
    %1424 = vmatprep.subr.bf16.mxu0 0
    %1425 = vmatpush1.bf16.msra.mxu0 0
    %1426 = vmatprep.subr.bf16.mxu0 0
    %1427 = vmatpush1.bf16.msra.mxu0 0
    %1428 = vmatprep.subr.bf16.mxu0 0
    %1429 = vmatpush1.bf16.msra.mxu0 0
    %1430 = vmatprep.mubr.bf16.mxu0 0
    %1431 = vmatmul.mubr.bf16.gmra.mrb[0].mxu0 %v1396
    %v1432 = vpop.f32.mrb[0].mxu0
    %v1433 = vadd.f32 %v1377, %v1432
    %v1434 = vpop.f32.mrb[0].mxu0
    %v1435 = vpop.f32.mrb[0].mxu0
    %v1436 = vadd.f32 %v1377, %v1435
    %v1437 = vpop.f32.mrb[0].mxu0
    %1438 = vdwg.mxu0
    %v1439 = vxor.u32 %v1433, 2147483648
    %v1440 = vxor.u32 %v1436, 2147483648
    %v1441 = vmul.f32 %v1439, 1.442695
    %v1442 = vpow.pop %v1441
    %v1443 = vmul.f32 %v1440, 1.442695
    %v1444 = vpow.pop %v1443
    %v1445 = vadd.f32 %v1442, 1.0
    %v1446 = vadd.f32 %v1444, 1.0
    %v1447 = vrcp.pop %v1445
    %v1448 = vmul.f32 1.0, %v1447
    %v1449 = vrcp.pop %v1446
    %v1450 = vmul.f32 1.0, %v1449
    %v1451 = vlaneseq
    %v1452 = vshrl.u32 %v1451, 7
    %v1453 = vsub.s32 3, %v1452
    %v1454 = vrot.slane %v34, %v1453
    %v1455 = vmul.f32 %v1448, %v1454
    %v1456 = vmul.f32 %v1450, %v1454
    %1459 = vrot.lane.b32.xlu0 %v1455, 64
    %v1460 = vpop.permute.xlu0 %1459
    %1461 = vrot.lane.b32.xlu0 %v1456, 64
    %v1462 = vpop.permute.xlu0 %1461
    %v1465 = vadd.f32 %v1433, %v1460
    %v1466 = vadd.f32 %v1436, %v1462
    %v1467 = vtanh.pop %v1465
    %v1468 = vtanh.pop %v1466
    %v1469 = vsub.f32 1.0, %v1448
    %v1470 = vsub.f32 1.0, %v1450
    %1473 = vrot.lane.b32.xlu0 %v1467, 96
    %v1474 = vpop.permute.xlu0 %1473
    %1475 = vrot.lane.b32.xlu0 %v1468, 96
    %v1476 = vpop.permute.xlu0 %1475
    %v1479 = vmul.f32 %v1469, %v1474
    %v1480 = vmul.f32 %v1470, %v1476
    %1483 = vrot.lane.b32.xlu0 %v1366, 96
    %v1484 = vpop.permute.xlu0 %1483
    %1485 = vrot.lane.b32.xlu0 %v1367, 96
    %v1486 = vpop.permute.xlu0 %1485
    %1491 = vrot.lane.b32.xlu0 %v1479, 112
    %v1492 = vpop.permute.xlu0 %1491
    %1493 = vrot.lane.b32.xlu0 %v1480, 112
    %v1494 = vpop.permute.xlu0 %1493
    %vm1497 = vcmask 130048
    %v1498 = vsel %vm1497, %v1484, %v1492
    %v1499 = vsel %vm1497, %v1486, %v1494
    %1500 = vrot.lane.b32.xlu0 %v1366, 80
    %v1501 = vpop.permute.xlu0 %1500
    %1502 = vrot.lane.b32.xlu0 %v1367, 80
    %v1503 = vpop.permute.xlu0 %1502
    %1506 = vrot.lane.b32.xlu0 %v1479, 96
    %v1507 = vpop.permute.xlu0 %1506
    %1508 = vrot.lane.b32.xlu0 %v1480, 96
    %v1509 = vpop.permute.xlu0 %1508
    %v1512 = vsel %vm1497, %v1501, %v1507
    %v1513 = vsel %vm1497, %v1503, %v1509
    %v1514 = vsel %vm566, %v358, -1e+30
    %v1515 = vsel %vm567, %v361, -1e+30
    %v1516 = vsel %vm680, %v366, -1e+30
    %v1517 = vsel %vm681, %v369, -1e+30
    %v1518 = vmax.f32 %v1514, %v1516
    %v1519 = vmax.f32 %v1515, %v1517
    %v1520 = vsel %vm794, %v374, -1e+30
    %v1521 = vsel %vm795, %v377, -1e+30
    %v1522 = vmax.f32 %v1518, %v1520
    %v1523 = vmax.f32 %v1519, %v1521
    %v1524 = vsel %vm908, %v382, -1e+30
    %v1525 = vsel %vm909, %v385, -1e+30
    %v1526 = vmax.f32 %v1522, %v1524
    %v1527 = vmax.f32 %v1523, %v1525
    %v1528 = vsel %vm1022, %v390, -1e+30
    %v1529 = vsel %vm1023, %v393, -1e+30
    %v1530 = vmax.f32 %v1526, %v1528
    %v1531 = vmax.f32 %v1527, %v1529
    %v1532 = vsel %vm1136, %v398, -1e+30
    %v1533 = vsel %vm1137, %v401, -1e+30
    %v1534 = vmax.f32 %v1530, %v1532
    %v1535 = vmax.f32 %v1531, %v1533
    %v1536 = vsel %vm1250, %v406, -1e+30
    %v1537 = vsel %vm1251, %v409, -1e+30
    %v1538 = vmax.f32 %v1534, %v1536
    %v1539 = vmax.f32 %v1535, %v1537
    %v1540 = vsel %vm1364, %v414, -1e+30
    %v1541 = vsel %vm1365, %v417, -1e+30
    %v1542 = vmax.f32 %v1538, %v1540
    %v1543 = vmax.f32 %v1539, %v1541
    %v1544 = vunpack.c.l.bf16 %v35
    %v1545 = vunpack.c.l.bf16 %v36
    %v1546 = vunpack.c.l.bf16 %v37
    %v1547 = vunpack.c.l.bf16 %v38
    %v1548 = vunpack.c.l.bf16 %v39
    %v1549 = vunpack.c.l.bf16 %v40
    %v1550 = vunpack.c.l.bf16 %v41
    %v1551 = vunpack.c.l.bf16 %v42
    %v1552 = vunpack.c.l.bf16 %v43
    %v1553 = vunpack.c.l.bf16 %v44
    %v1554 = vunpack.c.l.bf16 %v45
    %v1555 = vunpack.c.l.bf16 %v46
    %v1556 = vunpack.c.l.bf16 %v47
    %v1557 = vunpack.c.l.bf16 %v48
    %v1558 = vunpack.c.l.bf16 %v49
    %v1559 = vunpack.c.l.bf16 %v50
    %v1560 = vsub.f32 %v1514, %v1542
    %v1561 = vsub.f32 %v1515, %v1543
    %v1562 = vmul.f32 %v1560, 1.442695
    %v1563 = vpow.pop %v1562
    %v1564 = vmul.f32 %v1561, 1.442695
    %v1565 = vpow.pop %v1564
    %v1566 = vadd.f32 %v1563, 0.0
    %v1567 = vadd.f32 %v1565, 0.0
    %1569 = vset.pattern.permute.xlu0 0
    %1570 = vperm.xlu0 %1569, %v1563
    %v1571 = vpop.permute.xlu0 %1570
    %1574 = vset.pattern.permute.xlu0 0
    %1575 = vperm.xlu0 %1574, %v1565
    %v1576 = vpop.permute.xlu0 %1575
    %v1578 = vmul.f32 %v1571, %v1544
    %v1579 = vmul.f32 %v1576, %v1545
    %v1580 = vadd.f32 %v1578, 0.0
    %v1581 = vadd.f32 %v1579, 0.0
    %1582 = vset.pattern.permute.xlu0 1
    %1583 = vperm.xlu0 %1582, %v1563
    %v1584 = vpop.permute.xlu0 %1583
    %1586 = vset.pattern.permute.xlu0 1
    %1587 = vperm.xlu0 %1586, %v1565
    %v1588 = vpop.permute.xlu0 %1587
    %v1590 = vmul.f32 %v1584, %v1544
    %v1591 = vmul.f32 %v1588, %v1545
    %v1592 = vadd.f32 %v1590, 0.0
    %v1593 = vadd.f32 %v1591, 0.0
    %v1594 = vsub.f32 %v1516, %v1542
    %v1595 = vsub.f32 %v1517, %v1543
    %v1596 = vmul.f32 %v1594, 1.442695
    %v1597 = vpow.pop %v1596
    %v1598 = vmul.f32 %v1595, 1.442695
    %v1599 = vpow.pop %v1598
    %v1600 = vadd.f32 %v1566, %v1597
    %v1601 = vadd.f32 %v1567, %v1599
    %1603 = vset.pattern.permute.xlu0 0
    %1604 = vperm.xlu0 %1603, %v1597
    %v1605 = vpop.permute.xlu0 %1604
    %1608 = vset.pattern.permute.xlu0 0
    %1609 = vperm.xlu0 %1608, %v1599
    %v1610 = vpop.permute.xlu0 %1609
    %v1612 = vmul.f32 %v1605, %v1546
    %v1613 = vmul.f32 %v1610, %v1547
    %v1614 = vadd.f32 %v1580, %v1612
    %v1615 = vadd.f32 %v1581, %v1613
    %1616 = vset.pattern.permute.xlu0 1
    %1617 = vperm.xlu0 %1616, %v1597
    %v1618 = vpop.permute.xlu0 %1617
    %1620 = vset.pattern.permute.xlu0 1
    %1621 = vperm.xlu0 %1620, %v1599
    %v1622 = vpop.permute.xlu0 %1621
    %v1624 = vmul.f32 %v1618, %v1546
    %v1625 = vmul.f32 %v1622, %v1547
    %v1626 = vadd.f32 %v1592, %v1624
    %v1627 = vadd.f32 %v1593, %v1625
    %v1628 = vsub.f32 %v1520, %v1542
    %v1629 = vsub.f32 %v1521, %v1543
    %v1630 = vmul.f32 %v1628, 1.442695
    %v1631 = vpow.pop %v1630
    %v1632 = vmul.f32 %v1629, 1.442695
    %v1633 = vpow.pop %v1632
    %v1634 = vadd.f32 %v1600, %v1631
    %v1635 = vadd.f32 %v1601, %v1633
    %1637 = vset.pattern.permute.xlu0 0
    %1638 = vperm.xlu0 %1637, %v1631
    %v1639 = vpop.permute.xlu0 %1638
    %1642 = vset.pattern.permute.xlu0 0
    %1643 = vperm.xlu0 %1642, %v1633
    %v1644 = vpop.permute.xlu0 %1643
    %v1646 = vmul.f32 %v1639, %v1548
    %v1647 = vmul.f32 %v1644, %v1549
    %v1648 = vadd.f32 %v1614, %v1646
    %v1649 = vadd.f32 %v1615, %v1647
    %1650 = vset.pattern.permute.xlu0 1
    %1651 = vperm.xlu0 %1650, %v1631
    %v1652 = vpop.permute.xlu0 %1651
    %1654 = vset.pattern.permute.xlu0 1
    %1655 = vperm.xlu0 %1654, %v1633
    %v1656 = vpop.permute.xlu0 %1655
    %v1658 = vmul.f32 %v1652, %v1548
    %v1659 = vmul.f32 %v1656, %v1549
    %v1660 = vadd.f32 %v1626, %v1658
    %v1661 = vadd.f32 %v1627, %v1659
    %v1662 = vsub.f32 %v1524, %v1542
    %v1663 = vsub.f32 %v1525, %v1543
    %v1664 = vmul.f32 %v1662, 1.442695
    %v1665 = vpow.pop %v1664
    %v1666 = vmul.f32 %v1663, 1.442695
    %v1667 = vpow.pop %v1666
    %v1668 = vadd.f32 %v1634, %v1665
    %v1669 = vadd.f32 %v1635, %v1667
    %1671 = vset.pattern.permute.xlu0 0
    %1672 = vperm.xlu0 %1671, %v1665
    %v1673 = vpop.permute.xlu0 %1672
    %1676 = vset.pattern.permute.xlu0 0
    %1677 = vperm.xlu0 %1676, %v1667
    %v1678 = vpop.permute.xlu0 %1677
    %v1680 = vmul.f32 %v1673, %v1550
    %v1681 = vmul.f32 %v1678, %v1551
    %v1682 = vadd.f32 %v1648, %v1680
    %v1683 = vadd.f32 %v1649, %v1681
    %1684 = vset.pattern.permute.xlu0 1
    %1685 = vperm.xlu0 %1684, %v1665
    %v1686 = vpop.permute.xlu0 %1685
    %1688 = vset.pattern.permute.xlu0 1
    %1689 = vperm.xlu0 %1688, %v1667
    %v1690 = vpop.permute.xlu0 %1689
    %v1692 = vmul.f32 %v1686, %v1550
    %v1693 = vmul.f32 %v1690, %v1551
    %v1694 = vadd.f32 %v1660, %v1692
    %v1695 = vadd.f32 %v1661, %v1693
    %v1696 = vsub.f32 %v1528, %v1542
    %v1697 = vsub.f32 %v1529, %v1543
    %v1698 = vmul.f32 %v1696, 1.442695
    %v1699 = vpow.pop %v1698
    %v1700 = vmul.f32 %v1697, 1.442695
    %v1701 = vpow.pop %v1700
    %v1702 = vadd.f32 %v1668, %v1699
    %v1703 = vadd.f32 %v1669, %v1701
    %1705 = vset.pattern.permute.xlu0 0
    %1706 = vperm.xlu0 %1705, %v1699
    %v1707 = vpop.permute.xlu0 %1706
    %1710 = vset.pattern.permute.xlu0 0
    %1711 = vperm.xlu0 %1710, %v1701
    %v1712 = vpop.permute.xlu0 %1711
    %v1714 = vmul.f32 %v1707, %v1552
    %v1715 = vmul.f32 %v1712, %v1553
    %v1716 = vadd.f32 %v1682, %v1714
    %v1717 = vadd.f32 %v1683, %v1715
    %1718 = vset.pattern.permute.xlu0 1
    %1719 = vperm.xlu0 %1718, %v1699
    %v1720 = vpop.permute.xlu0 %1719
    %1722 = vset.pattern.permute.xlu0 1
    %1723 = vperm.xlu0 %1722, %v1701
    %v1724 = vpop.permute.xlu0 %1723
    %v1726 = vmul.f32 %v1720, %v1552
    %v1727 = vmul.f32 %v1724, %v1553
    %v1728 = vadd.f32 %v1694, %v1726
    %v1729 = vadd.f32 %v1695, %v1727
    %v1730 = vsub.f32 %v1532, %v1542
    %v1731 = vsub.f32 %v1533, %v1543
    %v1732 = vmul.f32 %v1730, 1.442695
    %v1733 = vpow.pop %v1732
    %v1734 = vmul.f32 %v1731, 1.442695
    %v1735 = vpow.pop %v1734
    %v1736 = vadd.f32 %v1702, %v1733
    %v1737 = vadd.f32 %v1703, %v1735
    %1739 = vset.pattern.permute.xlu0 0
    %1740 = vperm.xlu0 %1739, %v1733
    %v1741 = vpop.permute.xlu0 %1740
    %1744 = vset.pattern.permute.xlu0 0
    %1745 = vperm.xlu0 %1744, %v1735
    %v1746 = vpop.permute.xlu0 %1745
    %v1748 = vmul.f32 %v1741, %v1554
    %v1749 = vmul.f32 %v1746, %v1555
    %v1750 = vadd.f32 %v1716, %v1748
    %v1751 = vadd.f32 %v1717, %v1749
    %1752 = vset.pattern.permute.xlu0 1
    %1753 = vperm.xlu0 %1752, %v1733
    %v1754 = vpop.permute.xlu0 %1753
    %1756 = vset.pattern.permute.xlu0 1
    %1757 = vperm.xlu0 %1756, %v1735
    %v1758 = vpop.permute.xlu0 %1757
    %v1760 = vmul.f32 %v1754, %v1554
    %v1761 = vmul.f32 %v1758, %v1555
    %v1762 = vadd.f32 %v1728, %v1760
    %v1763 = vadd.f32 %v1729, %v1761
    %v1764 = vsub.f32 %v1536, %v1542
    %v1765 = vsub.f32 %v1537, %v1543
    %v1766 = vmul.f32 %v1764, 1.442695
    %v1767 = vpow.pop %v1766
    %v1768 = vmul.f32 %v1765, 1.442695
    %v1769 = vpow.pop %v1768
    %v1770 = vadd.f32 %v1736, %v1767
    %v1771 = vadd.f32 %v1737, %v1769
    %1773 = vset.pattern.permute.xlu0 0
    %1774 = vperm.xlu0 %1773, %v1767
    %v1775 = vpop.permute.xlu0 %1774
    %1778 = vset.pattern.permute.xlu0 0
    %1779 = vperm.xlu0 %1778, %v1769
    %v1780 = vpop.permute.xlu0 %1779
    %v1782 = vmul.f32 %v1775, %v1556
    %v1783 = vmul.f32 %v1780, %v1557
    %v1784 = vadd.f32 %v1750, %v1782
    %v1785 = vadd.f32 %v1751, %v1783
    %1786 = vset.pattern.permute.xlu0 1
    %1787 = vperm.xlu0 %1786, %v1767
    %v1788 = vpop.permute.xlu0 %1787
    %1790 = vset.pattern.permute.xlu0 1
    %1791 = vperm.xlu0 %1790, %v1769
    %v1792 = vpop.permute.xlu0 %1791
    %v1794 = vmul.f32 %v1788, %v1556
    %v1795 = vmul.f32 %v1792, %v1557
    %v1796 = vadd.f32 %v1762, %v1794
    %v1797 = vadd.f32 %v1763, %v1795
    %v1798 = vsub.f32 %v1540, %v1542
    %v1799 = vsub.f32 %v1541, %v1543
    %v1800 = vmul.f32 %v1798, 1.442695
    %v1801 = vpow.pop %v1800
    %v1802 = vmul.f32 %v1799, 1.442695
    %v1803 = vpow.pop %v1802
    %v1804 = vadd.f32 %v1770, %v1801
    %v1805 = vadd.f32 %v1771, %v1803
    %1807 = vset.pattern.permute.xlu0 0
    %1808 = vperm.xlu0 %1807, %v1801
    %v1809 = vpop.permute.xlu0 %1808
    %1812 = vset.pattern.permute.xlu0 0
    %1813 = vperm.xlu0 %1812, %v1803
    %v1814 = vpop.permute.xlu0 %1813
    %v1816 = vmul.f32 %v1809, %v1558
    %v1817 = vmul.f32 %v1814, %v1559
    %v1818 = vadd.f32 %v1784, %v1816
    %v1819 = vadd.f32 %v1785, %v1817
    %1820 = vset.pattern.permute.xlu0 1
    %1821 = vperm.xlu0 %1820, %v1801
    %v1822 = vpop.permute.xlu0 %1821
    %1824 = vset.pattern.permute.xlu0 1
    %1825 = vperm.xlu0 %1824, %v1803
    %v1826 = vpop.permute.xlu0 %1825
    %v1828 = vmul.f32 %v1822, %v1558
    %v1829 = vmul.f32 %v1826, %v1559
    %v1830 = vadd.f32 %v1796, %v1828
    %v1831 = vadd.f32 %v1797, %v1829
    %v1832 = vrcp.pop %v1804
    %v1833 = vrcp.pop %v1805
    %1835 = vset.pattern.permute.xlu0 0
    %1836 = vperm.xlu0 %1835, %v1832
    %v1837 = vpop.permute.xlu0 %1836
    %1840 = vset.pattern.permute.xlu0 0
    %1841 = vperm.xlu0 %1840, %v1833
    %v1842 = vpop.permute.xlu0 %1841
    %v1844 = vmul.f32 %v1818, %v1837
    %v1845 = vmul.f32 %v1819, %v1842
    %1846 = vset.pattern.permute.xlu0 1
    %1847 = vperm.xlu0 %1846, %v1832
    %v1848 = vpop.permute.xlu0 %1847
    %1850 = vset.pattern.permute.xlu0 1
    %1851 = vperm.xlu0 %1850, %v1833
    %v1852 = vpop.permute.xlu0 %1851
    %v1854 = vmul.f32 %v1830, %v1848
    %v1855 = vmul.f32 %v1831, %v1852
    %1858 = vrot.lane.b32.xlu0 %v1854, 32
    %v1859 = vpop.permute.xlu0 %1858
    %1860 = vrot.lane.b32.xlu0 %v1855, 32
    %v1861 = vpop.permute.xlu0 %1860
    %v1864 = vsel %vm113, %v1844, %v1859
    %v1865 = vsel %vm113, %v1845, %v1861
    %v1866 = vpack.c.bf16 %v1865, %v1864
    %v1867 = vld [vmem:[%s7] sm:$0xf]
    %v1868 = vld [vmem:[%s7 + $0x4] sm:$0xf]
    %v1869 = vld [vmem:[%s7 + $0x8] sm:$0xf]
    %v1870 = vld [vmem:[%s7 + $0xc] sm:$0xf]
    %v1871 = vld [vmem:[%s7 + $0x10] sm:$0xf]
    %v1872 = vld [vmem:[%s7 + $0x14] sm:$0xf]
    %v1873 = vld [vmem:[%s7 + $0x18] sm:$0xf]
    %v1874 = vld [vmem:[%s7 + $0x1c] sm:$0xf]
    %v1875 = vlaneseq
    %v1876 = vshrl.u32 %v1875, 7
    %v1877 = vsub.s32 4, %v1876
    %v1878 = vrot.slane %v34, %v1877
    %v1887 = vunpack.c.l.b16 %v1867
    %v1888 = vunpack.c.l.b16 %v1868
    %v1889 = vunpack.c.l.b16 %v1869
    %v1890 = vunpack.c.l.b16 %v1870
    %v1891 = vunpack.c.l.b16 %v1871
    %v1892 = vunpack.c.l.b16 %v1872
    %v1893 = vunpack.c.l.b16 %v1873
    %v1894 = vunpack.c.l.b16 %v1874
    %v1895 = vpack.c.b16 %v1888, %v1887
    %v1896 = vpack.c.b16 %v1890, %v1889
    %v1897 = vpack.c.b16 %v1892, %v1891
    %v1898 = vpack.c.b16 %v1894, %v1893
    %vm1903 = vcmask 523264
    %v1905 = vsel %vm1903, %v1866, 0
    %1907 = vmatprep.subr.bf16.mxu0 0
    %1908 = vmatpush1.bf16.msra.mxu0 %v1895
    %1909 = vmatprep.subr.bf16.mxu0 0
    %1910 = vmatpush1.bf16.msra.mxu0 %v1896
    %1911 = vmatprep.subr.bf16.mxu0 0
    %1912 = vmatpush1.bf16.msra.mxu0 %v1897
    %1913 = vmatprep.subr.bf16.mxu0 0
    %1914 = vmatpush1.bf16.msra.mxu0 %v1898
    %1915 = vmatprep.subr.bf16.mxu0 0
    %1916 = vmatpush1.bf16.msra.mxu0 0
    %1917 = vmatprep.subr.bf16.mxu0 0
    %1918 = vmatpush1.bf16.msra.mxu0 0
    %1919 = vmatprep.subr.bf16.mxu0 0
    %1920 = vmatpush1.bf16.msra.mxu0 0
    %1921 = vmatprep.subr.bf16.mxu0 0
    %1922 = vmatpush1.bf16.msra.mxu0 0
    %1923 = vmatprep.subr.bf16.mxu0 0
    %1924 = vmatpush1.bf16.msra.mxu0 0
    %1925 = vmatprep.subr.bf16.mxu0 0
    %1926 = vmatpush1.bf16.msra.mxu0 0
    %1927 = vmatprep.subr.bf16.mxu0 0
    %1928 = vmatpush1.bf16.msra.mxu0 0
    %1929 = vmatprep.subr.bf16.mxu0 0
    %1930 = vmatpush1.bf16.msra.mxu0 0
    %1931 = vmatprep.subr.bf16.mxu0 0
    %1932 = vmatpush1.bf16.msra.mxu0 0
    %1933 = vmatprep.subr.bf16.mxu0 0
    %1934 = vmatpush1.bf16.msra.mxu0 0
    %1935 = vmatprep.subr.bf16.mxu0 0
    %1936 = vmatpush1.bf16.msra.mxu0 0
    %1937 = vmatprep.subr.bf16.mxu0 0
    %1938 = vmatpush1.bf16.msra.mxu0 0
    %1939 = vmatprep.mubr.bf16.mxu0 0
    %1940 = vmatmul.mubr.bf16.gmra.mrb[0].mxu0 %v1905
    %v1941 = vpop.f32.mrb[0].mxu0
    %v1942 = vadd.f32 %v1878, %v1941
    %v1943 = vpop.f32.mrb[0].mxu0
    %v1944 = vpop.f32.mrb[0].mxu0
    %v1945 = vadd.f32 %v1878, %v1944
    %v1946 = vpop.f32.mrb[0].mxu0
    %1947 = vdwg.mxu0
    %v1948 = vxor.u32 %v1942, 2147483648
    %v1949 = vxor.u32 %v1945, 2147483648
    %v1950 = vmul.f32 %v1948, 1.442695
    %v1951 = vpow.pop %v1950
    %v1952 = vmul.f32 %v1949, 1.442695
    %v1953 = vpow.pop %v1952
    %v1954 = vadd.f32 %v1951, 1.0
    %v1955 = vadd.f32 %v1953, 1.0
    %v1956 = vrcp.pop %v1954
    %v1957 = vmul.f32 1.0, %v1956
    %v1958 = vrcp.pop %v1955
    %v1959 = vmul.f32 1.0, %v1958
    %v1960 = vadd.f32 %v1498, %v1957
    %v1961 = vadd.f32 %v1499, %v1959
    %v1962 = vsel %vm113, %v1960, 0.0
    %1963 = vadd.xlane.f32.xlu0 %v1962
    %v1964 = vpop.xlane.xlu0 %1963
    %v1965 = vsel %vm113, %v1961, 0.0
    %1966 = vadd.xlane.f32.xlu0 %v1965
    %v1967 = vpop.xlane.xlu0 %1966
    %v1968 = vrcp.pop 32.0
    %v1969 = vmul.f32 %v1964, %v1968
    %v1970 = vmul.f32 %v1967, %v1968
    %v1971 = vsub.f32 %v1960, %v1969
    %v1972 = vsub.f32 %v1961, %v1970
    %v1973 = vmul.f32 %v1971, %v1971
    %v1974 = vmul.f32 %v1972, %v1972
    %v1975 = vsel %vm113, %v1973, 0.0
    %1976 = vadd.xlane.f32.xlu0 %v1975
    %v1977 = vpop.xlane.xlu0 %1976
    %v1978 = vsel %vm113, %v1974, 0.0
    %1979 = vadd.xlane.f32.xlu0 %v1978
    %v1980 = vpop.xlane.xlu0 %1979
    %v1981 = vmul.f32 %v1977, %v1968
    %v1982 = vmul.f32 %v1980, %v1968
    %v1983 = vadd.f32 %v1981, 1e-05
    %v1984 = vadd.f32 %v1982, 1e-05
    %v1985 = vrsqrt.pop %v1983
    %v1986 = vrsqrt.pop %v1984
    %v1987 = vmul.f32 %v1971, %v1985
    %v1988 = vmul.f32 %v1972, %v1986
    %v1989 = vlaneseq
    %v1990 = vshrl.u32 %v1989, 7
    %v1991 = vsub.s32 5, %v1990
    %v1992 = vrot.slane %v34, %v1991
    %v1993 = vmul.f32 %v1987, %v1992
    %v1994 = vmul.f32 %v1988, %v1992
    %v1995 = vlaneseq
    %v1996 = vshrl.u32 %v1995, 7
    %v1997 = vsub.s32 6, %v1996
    %v1998 = vrot.slane %v34, %v1997
    %v1999 = vadd.f32 %v1993, %v1998
    %v2000 = vadd.f32 %v1994, %v1998
    %2003 = vrot.lane.b32.xlu0 %v1512, 32
    %v2004 = vpop.permute.xlu0 %2003
    %2005 = vrot.lane.b32.xlu0 %v1513, 32
    %v2006 = vpop.permute.xlu0 %2005
    %v2009 = vadd.f32 %v1942, %v2004
    %v2010 = vadd.f32 %v1945, %v2006
    %2013 = vrot.lane.b32.xlu0 %v1498, 64
    %v2014 = vpop.permute.xlu0 %2013
    %2015 = vrot.lane.b32.xlu0 %v1499, 64
    %v2016 = vpop.permute.xlu0 %2015
    %v2019 = vsel %vm113, %v1999, %v2009
    %v2020 = vsel %vm113, %v2000, %v2010
    %v2021 = vsel %vm1903, %v2019, %v2014
    %v2022 = vsel %vm1903, %v2020, %v2016
    %vm2023 = vcmask 785408
    %v2024 = vsel %vm2023, %v2021, 0.0
    %v2025 = vsel %vm2023, %v2022, 0.0
    %2026 = vst [vmem:[#allocation2] sm:$0xff] %v2024
    %2027 = vst [vmem:[#allocation2 + $0x8] sm:$0xff] %v2025
    // Predicated region
    $region38: #{tpu_custom_call.1} parent=1 // pred_check
      _
    $region39: #{tpu_custom_call.1} parent=1 // pred_check_branch
      %2029 = sbr.rel (0) target = $region41
    $region40: #{tpu_custom_call.1} parent=1 // pred_region
      %s2031 = ssub.s32 256, 256
      %2032 = vsyncadd [#allocation3], %s2031
      %s2033 = sshll.u32 [#allocation2], 4
      %s2034 = int_to_ptr.vmem [resolvable:$true] %s2033
      %2039 = dma.vmem_to_hbm [thread:$0]  %s2034, 256, %s9, [#allocation3], 128, 128, 8
    $region41: #{tpu_custom_call.1} parent=1 // pred_fallthru
      _
    // Predicated region
    $region42: #{tpu_custom_call.1} parent=1 // pred_check
      _
    $region43: #{tpu_custom_call.1} parent=1 // pred_check_branch
      %2041 = sbr.rel (0) target = $region45
    $region44: #{tpu_custom_call.1} parent=1 // pred_region
      %2042 = dma.done [#allocation3], 256
    $region45: #{tpu_custom_call.1} parent=1 // pred_fallthru
      _
    %2043 = vsyncpa [#allocation3], 1

</llo_original>
